<compile_context>
chip_gen: v5e
topology: v5e:2x2
jax: 0.10.0
libtpu: 0.0.40
codegen_flags: <defaults>
</compile_context>

<pallas_src>
import functools

import numpy as np
import jax
import jax.numpy as jnp
from jax.experimental import pallas as pl
from jax.experimental.pallas import tpu as pltpu


# ----------------------------------------------------------------------------
# Static helpers (host / trace time, numpy only).
# ----------------------------------------------------------------------------
def _shuffle_perm(num_ch, groups):
    """channel_shuffle(x, groups)[c] == x[perm[c]] (pure channel permutation)."""
    return np.arange(num_ch).reshape(groups, num_ch // groups).T.reshape(-1)


# ----------------------------------------------------------------------------
# Fused kernel factory: whole UNetBlock_DW_CF_Res forward for Bt batch samples.
# Working layout inside the kernel: (channels, H*W) -> lanes = H*W (dense).
# ----------------------------------------------------------------------------
def _make_block_kernel(*, H, W, cin, cout, norm_groups, Bt, eps, neg_slope,
                       pad_l, pad_r):
    S = H * W
    padded = pad_l + S + pad_r
    cpg = cout // norm_groups                  # GroupNorm channels per group
    inv_cnt = 1.0 / float(cpg * S)
    mxu1 = (cin >= 8 and cout >= 8)            # tiny contractions stay on the VPU
    mxu2 = (cout >= 8)

    def ds_layer(inp, n_in, use_mxu, w_ref, dw_ref, vec_ref, m_ref,
                 mask_l, mask_r, pad_ref):
        # ---- grouped 1x1 conv (dense block-diagonal weight) -----------------
        if use_mxu:
            y = jnp.dot(w_ref[...], inp, preferred_element_type=jnp.float32)
        else:
            y = w_ref[:, 0:1] * inp[0:1, :]
            for ci in range(1, n_in):
                y = y + w_ref[:, ci:ci + 1] * inp[ci:ci + 1, :]
        y = y + vec_ref[:, 0:1]                                   # pointwise bias

        # ---- depthwise 3x3 (padding=1) via zero-halo VMEM scratch -----------
        pad_ref[:, pad_l:pad_l + S] = y                           # aligned store

        def col_group(dwc):                    # sum over dh for one dw column
            t = None
            for dh in (-1, 0, 1):
                k = (dh + 1) * 3 + (dwc + 1)
                start = pad_l + dh * W + dwc
                term = pad_ref[:, start:start + S] * dw_ref[:, k:k + 1]
                t = term if t is None else t + term
            return t

        acc = vec_ref[:, 1:2] + col_group(0)                      # dw bias + centre col
        acc = acc + col_group(-1) * mask_l                        # 1 mask mul / column
        acc = acc + col_group(1) * mask_r

        # ---- GroupNorm (two-pass, membership-matrix reduce) + LeakyReLU -----
        m = m_ref[...]                                            # (C, G) one-hot f32
        s1 = jnp.sum(acc, axis=1, keepdims=True)                  # (C, 1)
        g1 = jnp.sum(s1 * m, axis=0, keepdims=True)               # (1, G)
        mean_c = jnp.sum(g1 * m, axis=1, keepdims=True) * inv_cnt  # (C, 1)
        d = acc - mean_c
        s2 = jnp.sum(d * d, axis=1, keepdims=True)
        g2 = jnp.sum(s2 * m, axis=0, keepdims=True)
        var_c = jnp.sum(g2 * m, axis=1, keepdims=True) * inv_cnt
        scale_c = jax.lax.rsqrt(var_c + eps) * vec_ref[:, 2:3]    # * gamma
        yn = d * scale_c + vec_ref[:, 3:4]                        # + beta
        return jnp.where(yn >= 0, yn, neg_slope * yn)             # LeakyReLU

    def kernel(x_ref, w1_ref, dw1_ref, v1_ref, m1_ref,
               w2_ref, dw2_ref, v2_ref, m2_ref, o_ref, pad_ref):
        # Zero only the halo lanes; the interior is fully rewritten every layer.
        pad_ref[:, 0:pad_l] = jnp.zeros((cout, pad_l), jnp.float32)
        pad_ref[:, pad_l + S:padded] = jnp.zeros((cout, pad_r), jnp.float32)

        # Horizontal-edge validity masks, built in-kernel (no captured consts).
        col = jax.lax.broadcasted_iota(jnp.int32, (1, S), 1) % W
        mask_l = (col >= 1).astype(jnp.float32)
        mask_r = (col <= W - 2).astype(jnp.float32)

        for bi in range(Bt):                                      # small static tile
            x = x_ref[bi].astype(jnp.float32)
            f1 = ds_layer(x, cin, mxu1, w1_ref, dw1_ref, v1_ref, m1_ref,
                          mask_l, mask_r, pad_ref)
            # Park f1 in the VMEM output block: frees its vregs for layer 2.
            o_ref[bi] = f1.astype(o_ref.dtype)
            f1v = o_ref[bi].astype(jnp.float32)
            f2 = ds_layer(f1v, cout, mxu2, w2_ref, dw2_ref, v2_ref, m2_ref,
                          mask_l, mask_r, pad_ref)
            # Residual as read-modify-write of the output block.
            o_ref[bi] = (o_ref[bi].astype(jnp.float32) + f2).astype(o_ref.dtype)

    return kernel


# ----------------------------------------------------------------------------
# Parameter preparation: dense block-diagonal 1x1 weights + per-channel params,
# with the channel shuffle that FOLLOWS each layer folded into the output-
# channel order (so the kernel never permutes activations at runtime).  The
# GroupNorm group assignment for the permuted ordering is exported as a (C, G)
# one-hot membership matrix (kernel input -> no captured constants).
# ----------------------------------------------------------------------------
def _prep_layer(p, cin, cout, conv_groups, perm, norm_groups):
    in_pg, out_pg = cin // conv_groups, cout // conv_groups
    w = jnp.zeros((cout, cin), jnp.float32)
    for g in range(conv_groups):
        w = w.at[g * out_pg:(g + 1) * out_pg, g * in_pg:(g + 1) * in_pg].set(
            p["pw_w"][g * out_pg:(g + 1) * out_pg, :, 0, 0].astype(jnp.float32))
    w = w[perm, :]                                       # fold shuffle (rows = out ch)
    dw = p["dw_w"][perm, 0].reshape(cout, 9).astype(jnp.float32)   # 3x3 taps, row-major
    vec = jnp.stack([p["pw_b"][perm], p["dw_b"][perm],
                     p["gamma"][perm], p["beta"][perm]], axis=1).astype(jnp.float32)
    cpg = cout // norm_groups
    gid = np.asarray(perm) // cpg
    m = (gid[:, None] == np.arange(norm_groups)[None, :]).astype(np.float32)
    return w, dw, vec, jnp.asarray(m)


def unet_block_dw_cf_res(x, params, *, groups, out_chns, neg_slope, eps=1e-5):
    B, cin, H, W = x.shape
    cout = out_chns
    S = H * W
    assert cin % groups == 0 and cout % groups == 0
    norm_groups = groups                                  # module: norm_group=groups

    # Static channel-shuffle permutations (folded into weights; zero runtime cost).
    perm1 = _shuffle_perm(cout, groups) if groups > 1 else np.arange(cout)
    perm2 = _shuffle_perm(cout, cout // groups) if groups > 1 else np.arange(cout)

    w1, dw1, v1, m1 = _prep_layer(params["conv1"], cin, cout, groups, perm1, norm_groups)
    w2, dw2, v2, m2 = _prep_layer(params["conv2"], cout, cout, groups, perm2, norm_groups)

    # Halo scratch geometry: lane-aligned left pad so the interior store is aligned.
    pad_l = ((W + 1 + 127) // 128) * 128
    pad_r = pad_l
    padded = pad_l + S + pad_r

    # --- batch tile: fatten grid steps (amortize ~0.35us/step), keep >=2 steps ---
    param_bytes = 4 * (cout * cin + cout * cout + 2 * cout * (9 + 4 + norm_groups))

    def vmem_est(bt):                       # double-buffered in/out blocks + scratch
        return 4 * (2 * bt * cin * S + 2 * bt * cout * S + cout * padded) + 2 * param_bytes

    budget = 20 * 1024 * 1024
    Bt = 1
    for cand in range(2, min(B, 8) + 1):
        if B % cand == 0 and B // cand >= 2 and vmem_est(cand) <= budget:
            Bt = cand
    nb = B // Bt
    # TODO(synk): if vmem_est(1) exceeds the per-generation VMEM (v7x: 64 MiB),
    #             switch to spatial row-band tiling with a 1-row halo and a
    #             tiled two-pass GroupNorm instead of whole-sample residency.

    kernel = _make_block_kernel(
        H=H, W=W, cin=cin, cout=cout, norm_groups=norm_groups, Bt=Bt,
        eps=eps, neg_slope=neg_slope, pad_l=pad_l, pad_r=pad_r)

    cost = pl.CostEstimate(
        flops=int(B * (2 * cin * cout * S + 2 * cout * cout * S + 48 * cout * S)),
        transcendentals=int(B * 2 * norm_groups),
        bytes_accessed=int(4 * B * (cin + cout) * S + param_bytes))

    x_flat = x.reshape(B, cin, S)                         # free reshape (NCHW-native)
    out = pl.pallas_call(
        kernel,
        out_shape=jax.ShapeDtypeStruct((B, cout, S), x.dtype),
        grid=(nb,),
        in_specs=[
            pl.BlockSpec((Bt, cin, S), lambda b: (b, 0, 0)),
            pl.BlockSpec((cout, cin), lambda b: (0, 0)),
            pl.BlockSpec((cout, 9), lambda b: (0, 0)),
            pl.BlockSpec((cout, 4), lambda b: (0, 0)),
            pl.BlockSpec((cout, norm_groups), lambda b: (0, 0)),
            pl.BlockSpec((cout, cout), lambda b: (0, 0)),
            pl.BlockSpec((cout, 9), lambda b: (0, 0)),
            pl.BlockSpec((cout, 4), lambda b: (0, 0)),
            pl.BlockSpec((cout, norm_groups), lambda b: (0, 0)),
        ],
        out_specs=pl.BlockSpec((Bt, cout, S), lambda b: (b, 0, 0)),
        scratch_shapes=[pltpu.VMEM((cout, padded), jnp.float32)],
        compiler_params=pltpu.CompilerParams(
            dimension_semantics=("parallel",),
            vmem_limit_bytes=int(max(32 * 1024 * 1024,
                                     min(2 * vmem_est(Bt), 127 * 1024 * 1024)))),
        cost_estimate=cost,
    )(x_flat, w1, dw1, v1, m1, w2, dw2, v2, m2)
    return out.reshape(B, cout, H, W)


# ----------------------------------------------------------------------------
# Pure-JAX (XLA) reference for validation.
# ----------------------------------------------------------------------------
def channel_shuffle_jax(x, groups):
    B, C, H, W = x.shape
    x = x.reshape(B, groups, C // groups, H, W)
    x = jnp.transpose(x, (0, 2, 1, 3, 4))
    return x.reshape(B, C, H, W)


def _conv2d_ref(x, w, b, groups, padding):
    y = jax.lax.conv_general_dilated(
        x, w, window_strides=(1, 1),
        padding=((padding, padding), (padding, padding)),
        dimension_numbers=("NCHW", "OIHW", "NCHW"),
        feature_group_count=groups,
        precision=jax.lax.Precision.HIGHEST)
    return y + b[None, :, None, None]


def _group_norm_ref(x, ng, gamma, beta, eps=1e-5):
    B, C, H, W = x.shape
    xg = x.reshape(B, ng, C // ng, H, W)
    mean = xg.mean(axis=(2, 3, 4), keepdims=True)
    var = ((xg - mean) ** 2).mean(axis=(2, 3, 4), keepdims=True)
    xn = ((xg - mean) / jnp.sqrt(var + eps)).reshape(B, C, H, W)
    return xn * gamma[None, :, None, None] + beta[None, :, None, None]


def _ds_layer_ref(x, p, conv_groups, norm_groups, neg_slope):
    y = _conv2d_ref(x, p["pw_w"], p["pw_b"], conv_groups, 0)
    cout = p["pw_w"].shape[0]
    y = _conv2d_ref(y, p["dw_w"], p["dw_b"], cout, 1)
    y = _group_norm_ref(y, norm_groups, p["gamma"], p["beta"])
    return jnp.where(y >= 0, y, neg_slope * y)


def _block_ref(x, params, groups, out_chns, neg_slope):
    f1 = _ds_layer_ref(x, params["conv1"], groups, groups, neg_slope)
    if groups > 1:
        f1 = channel_shuffle_jax(f1, groups)
    f2 = _ds_layer_ref(f1, params["conv2"], groups, groups, neg_slope)
    if groups > 1:
        f2 = channel_shuffle_jax(f2, out_chns // groups)
    return f1 + f2


# ----------------------------------------------------------------------------
# Deterministic parameter init (shapes per the PyTorch module's __init__).
# ----------------------------------------------------------------------------
def init_params(key, in_chns, out_chns, groups):
    ks = jax.random.split(key, 12)

    def layer(kz, cin, cout):
        return dict(
            pw_w=0.3 * jax.random.normal(kz[0], (cout, cin // groups, 1, 1), jnp.float32),
            pw_b=0.1 * jax.random.normal(kz[1], (cout,), jnp.float32),
            dw_w=0.3 * jax.random.normal(kz[2], (cout, 1, 3, 3), jnp.float32),
            dw_b=0.1 * jax.random.normal(kz[3], (cout,), jnp.float32),
            gamma=1.0 + 0.1 * jax.random.normal(kz[4], (cout,), jnp.float32),
            beta=0.1 * jax.random.normal(kz[5], (cout,), jnp.float32),
        )

    return dict(conv1=layer(ks[:6], in_chns, out_chns),
                conv2=layer(ks[6:], out_chns, out_chns))


if __name__ == "__main__":
    B, Cin, Cout, H, W = 2, 4, 8, 16, 16
    groups = 2
    neg_slope = 0.01     # acti_func='leakyrelu', acti_func_param=0.01

    key = jax.random.PRNGKey(0)
    kx, kp = jax.random.split(key)
    x = jax.random.normal(kx, (B, Cin, H, W), jnp.float32)
    params = init_params(kp, Cin, Cout, groups)

    fwd = jax.jit(functools.partial(
        unet_block_dw_cf_res, groups=groups, out_chns=Cout, neg_slope=neg_slope))
    out = jax.block_until_ready(fwd(x, params))
    assert out.shape == (B, Cout, H, W) and out.dtype == jnp.float32

    ref = jax.block_until_ready(_block_ref(x, params, groups, Cout, neg_slope))
    # Tolerance allows default (non-HIGHEST) MXU matmul precision on the 1x1 conv.
    np.testing.assert_allclose(np.asarray(out), np.asarray(ref), atol=2e-2, rtol=2e-2)

    print("KERNEL_OK")
</pallas_src>

<mosaic_0001>
module attributes {stable_mosaic.version = 11 : i64} {
  func.func @kernel(%arg0: i32, %arg1: memref<1x4x256xf32, #tpu.memory_space<vmem>>, %arg2: memref<8x4xf32, #tpu.memory_space<vmem>>, %arg3: memref<8x9xf32, #tpu.memory_space<vmem>>, %arg4: memref<8x4xf32, #tpu.memory_space<vmem>>, %arg5: memref<8x2xf32, #tpu.memory_space<vmem>>, %arg6: memref<8x8xf32, #tpu.memory_space<vmem>>, %arg7: memref<8x9xf32, #tpu.memory_space<vmem>>, %arg8: memref<8x4xf32, #tpu.memory_space<vmem>>, %arg9: memref<8x2xf32, #tpu.memory_space<vmem>>, %arg10: memref<1x8x256xf32, #tpu.memory_space<vmem>>, %arg11: memref<8x512xf32, #tpu.memory_space<vmem>>) attributes {dimension_semantics = [#tpu.dimension_semantics<parallel>], iteration_bounds = array<i64: 2>, scalar_prefetch = 0 : i64, scratch_operands = 1 : i64, tpu.core_type = #tpu.core_type<tc>, window_params = [{transform_indices = @transform_0, window_bounds = array<i64: 1, 4, 256>}, {pipeline_mode = #tpu.pipeline_mode<synchronous>, transform_indices = @transform_1, window_bounds = array<i64: 8, 4>}, {pipeline_mode = #tpu.pipeline_mode<synchronous>, transform_indices = @transform_2, window_bounds = array<i64: 8, 9>}, {pipeline_mode = #tpu.pipeline_mode<synchronous>, transform_indices = @transform_3, window_bounds = array<i64: 8, 4>}, {pipeline_mode = #tpu.pipeline_mode<synchronous>, transform_indices = @transform_4, window_bounds = array<i64: 8, 2>}, {pipeline_mode = #tpu.pipeline_mode<synchronous>, transform_indices = @transform_5, window_bounds = array<i64: 8, 8>}, {pipeline_mode = #tpu.pipeline_mode<synchronous>, transform_indices = @transform_6, window_bounds = array<i64: 8, 9>}, {pipeline_mode = #tpu.pipeline_mode<synchronous>, transform_indices = @transform_7, window_bounds = array<i64: 8, 4>}, {pipeline_mode = #tpu.pipeline_mode<synchronous>, transform_indices = @transform_8, window_bounds = array<i64: 8, 2>}, {transform_indices = @transform_9, window_bounds = array<i64: 1, 8, 256>}]} {
    %cst = arith.constant 0.000000e+00 : f32
    %0 = vector.broadcast %cst : f32 to vector<8x128xf32>
    %c0 = arith.constant 0 : index
    %c0_0 = arith.constant 0 : index
    %1 = vector.load %arg11[%c0, %c0_0] : memref<8x512xf32, #tpu.memory_space<vmem>>, vector<8x128xf32>
    tpu.vector_store %arg11[%c0, %c0_0], %0 {strides = array<i32>} : memref<8x512xf32, #tpu.memory_space<vmem>>, vector<8x128xf32>,
    %cst_1 = arith.constant 0.000000e+00 : f32
    %2 = vector.broadcast %cst_1 : f32 to vector<8x128xf32>
    %c0_2 = arith.constant 0 : index
    %c384 = arith.constant 384 : index
    %3 = vector.load %arg11[%c0_2, %c384] : memref<8x512xf32, #tpu.memory_space<vmem>>, vector<8x128xf32>
    tpu.vector_store %arg11[%c0_2, %c384], %2 {strides = array<i32>} : memref<8x512xf32, #tpu.memory_space<vmem>>, vector<8x128xf32>,
    %4 = tpu.iota {dimensions = array<i32: 1>} : vector<1x256xi32>
    %c16_i32 = arith.constant 16 : i32
    %c0_i32 = arith.constant 0 : i32
    %5 = arith.cmpi eq, %c16_i32, %c0_i32 : i32
    %c1_i32 = arith.constant 1 : i32
    %6 = arith.select %5, %c1_i32, %c16_i32 : i32
    %7 = vector.broadcast %6 : i32 to vector<1x256xi32>
    %8 = arith.remsi %4, %7 : vector<1x256xi32>
    %c0_i32_3 = arith.constant 0 : i32
    %9 = vector.broadcast %c0_i32_3 : i32 to vector<1x256xi32>
    %10 = arith.cmpi ne, %8, %9 : vector<1x256xi32>
    %c0_i32_4 = arith.constant 0 : i32
    %11 = vector.broadcast %c0_i32_4 : i32 to vector<1x256xi32>
    %12 = arith.cmpi slt, %8, %11 : vector<1x256xi32>
    %c0_i32_5 = arith.constant 0 : i32
    %13 = arith.cmpi slt, %6, %c0_i32_5 : i32
    %14 = vector.broadcast %13 : i1 to vector<1x256xi1>
    %15 = vector.broadcast %14 : vector<1x256xi1> to vector<1x256xi1>
    %16 = arith.xori %12, %15 : vector<1x256xi1>
    %17 = arith.andi %16, %10 : vector<1x256xi1>
    %18 = vector.broadcast %6 : i32 to vector<1x256xi32>
    %19 = arith.addi %8, %18 : vector<1x256xi32>
    %20 = arith.select %17, %19, %8 : vector<1x256xi1>, vector<1x256xi32>
    %c1_i32_6 = arith.constant 1 : i32
    %21 = vector.broadcast %c1_i32_6 : i32 to vector<1x256xi32>
    %22 = arith.cmpi sge, %20, %21 : vector<1x256xi32>
    %23 = arith.extui %22 : vector<1x256xi1> to vector<1x256xi32>
    %24 = arith.sitofp %23 : vector<1x256xi32> to vector<1x256xf32>
    %c14_i32 = arith.constant 14 : i32
    %25 = vector.broadcast %c14_i32 : i32 to vector<1x256xi32>
    %26 = arith.cmpi sle, %20, %25 : vector<1x256xi32>
    %27 = arith.extui %26 : vector<1x256xi1> to vector<1x256xi32>
    %28 = arith.sitofp %27 : vector<1x256xi32> to vector<1x256xf32>
    %c0_7 = arith.constant 0 : index
    %c0_8 = arith.constant 0 : index
    %c0_9 = arith.constant 0 : index
    %29 = vector.load %arg1[%c0_7, %c0_8, %c0_9] : memref<1x4x256xf32, #tpu.memory_space<vmem>>, vector<1x4x256xf32>
    %30 = vector.shape_cast %29 : vector<1x4x256xf32> to vector<4x256xf32>
    %c0_10 = arith.constant 0 : index
    %c0_11 = arith.constant 0 : index
    %31 = vector.load %arg2[%c0_10, %c0_11] : memref<8x4xf32, #tpu.memory_space<vmem>>, vector<8x1xf32>
    %32 = vector.extract_strided_slice %30 {offsets = [0, 0], sizes = [1, 256], strides = [1, 1]} : vector<4x256xf32> to vector<1x256xf32>
    %33 = vector.broadcast %31 : vector<8x1xf32> to vector<8x256xf32>
    %34 = vector.broadcast %32 : vector<1x256xf32> to vector<8x256xf32>
    %35 = arith.mulf %33, %34 : vector<8x256xf32>
    %c0_12 = arith.constant 0 : index
    %c1 = arith.constant 1 : index
    %36 = vector.load %arg2[%c0_12, %c1] : memref<8x4xf32, #tpu.memory_space<vmem>>, vector<8x1xf32>
    %37 = vector.extract_strided_slice %30 {offsets = [1, 0], sizes = [1, 256], strides = [1, 1]} : vector<4x256xf32> to vector<1x256xf32>
    %38 = vector.broadcast %36 : vector<8x1xf32> to vector<8x256xf32>
    %39 = vector.broadcast %37 : vector<1x256xf32> to vector<8x256xf32>
    %40 = arith.mulf %38, %39 : vector<8x256xf32>
    %41 = arith.addf %35, %40 : vector<8x256xf32>
    %c0_13 = arith.constant 0 : index
    %c2 = arith.constant 2 : index
    %42 = vector.load %arg2[%c0_13, %c2] : memref<8x4xf32, #tpu.memory_space<vmem>>, vector<8x1xf32>
    %43 = vector.extract_strided_slice %30 {offsets = [2, 0], sizes = [1, 256], strides = [1, 1]} : vector<4x256xf32> to vector<1x256xf32>
    %44 = vector.broadcast %42 : vector<8x1xf32> to vector<8x256xf32>
    %45 = vector.broadcast %43 : vector<1x256xf32> to vector<8x256xf32>
    %46 = arith.mulf %44, %45 : vector<8x256xf32>
    %47 = arith.addf %41, %46 : vector<8x256xf32>
    %c0_14 = arith.constant 0 : index
    %c3 = arith.constant 3 : index
    %48 = vector.load %arg2[%c0_14, %c3] : memref<8x4xf32, #tpu.memory_space<vmem>>, vector<8x1xf32>
    %49 = vector.extract_strided_slice %30 {offsets = [3, 0], sizes = [1, 256], strides = [1, 1]} : vector<4x256xf32> to vector<1x256xf32>
    %50 = vector.broadcast %48 : vector<8x1xf32> to vector<8x256xf32>
    %51 = vector.broadcast %49 : vector<1x256xf32> to vector<8x256xf32>
    %52 = arith.mulf %50, %51 : vector<8x256xf32>
    %53 = arith.addf %47, %52 : vector<8x256xf32>
    %c0_15 = arith.constant 0 : index
    %c0_16 = arith.constant 0 : index
    %54 = vector.load %arg4[%c0_15, %c0_16] : memref<8x4xf32, #tpu.memory_space<vmem>>, vector<8x1xf32>
    %55 = vector.broadcast %54 : vector<8x1xf32> to vector<8x256xf32>
    %56 = arith.addf %53, %55 : vector<8x256xf32>
    %c0_17 = arith.constant 0 : index
    %c128 = arith.constant 128 : index
    %57 = vector.load %arg11[%c0_17, %c128] : memref<8x512xf32, #tpu.memory_space<vmem>>, vector<8x256xf32>
    tpu.vector_store %arg11[%c0_17, %c128], %56 {strides = array<i32>} : memref<8x512xf32, #tpu.memory_space<vmem>>, vector<8x256xf32>,
    %c0_18 = arith.constant 0 : index
    %c1_19 = arith.constant 1 : index
    %58 = vector.load %arg4[%c0_18, %c1_19] : memref<8x4xf32, #tpu.memory_space<vmem>>, vector<8x1xf32>
    %c0_20 = arith.constant 0 : index
    %c112 = arith.constant 112 : index
    %59 = vector.load %arg11[%c0_20, %c112] : memref<8x512xf32, #tpu.memory_space<vmem>>, vector<8x256xf32>
    %c0_21 = arith.constant 0 : index
    %c1_22 = arith.constant 1 : index
    %60 = vector.load %arg3[%c0_21, %c1_22] : memref<8x9xf32, #tpu.memory_space<vmem>>, vector<8x1xf32>
    %61 = vector.broadcast %60 : vector<8x1xf32> to vector<8x256xf32>
    %62 = arith.mulf %59, %61 : vector<8x256xf32>
    %c0_23 = arith.constant 0 : index
    %c128_24 = arith.constant 128 : index
    %63 = vector.load %arg11[%c0_23, %c128_24] : memref<8x512xf32, #tpu.memory_space<vmem>>, vector<8x256xf32>
    %c0_25 = arith.constant 0 : index
    %c4 = arith.constant 4 : index
    %64 = vector.load %arg3[%c0_25, %c4] : memref<8x9xf32, #tpu.memory_space<vmem>>, vector<8x1xf32>
    %65 = vector.broadcast %64 : vector<8x1xf32> to vector<8x256xf32>
    %66 = arith.mulf %63, %65 : vector<8x256xf32>
    %67 = arith.addf %62, %66 : vector<8x256xf32>
    %c0_26 = arith.constant 0 : index
    %c144 = arith.constant 144 : index
    %68 = vector.load %arg11[%c0_26, %c144] : memref<8x512xf32, #tpu.memory_space<vmem>>, vector<8x256xf32>
    %c0_27 = arith.constant 0 : index
    %c7 = arith.constant 7 : index
    %69 = vector.load %arg3[%c0_27, %c7] : memref<8x9xf32, #tpu.memory_space<vmem>>, vector<8x1xf32>
    %70 = vector.broadcast %69 : vector<8x1xf32> to vector<8x256xf32>
    %71 = arith.mulf %68, %70 : vector<8x256xf32>
    %72 = arith.addf %67, %71 : vector<8x256xf32>
    %73 = vector.broadcast %58 : vector<8x1xf32> to vector<8x256xf32>
    %74 = arith.addf %73, %72 : vector<8x256xf32>
    %c0_28 = arith.constant 0 : index
    %c111 = arith.constant 111 : index
    %75 = vector.load %arg11[%c0_28, %c111] : memref<8x512xf32, #tpu.memory_space<vmem>>, vector<8x256xf32>
    %c0_29 = arith.constant 0 : index
    %c0_30 = arith.constant 0 : index
    %76 = vector.load %arg3[%c0_29, %c0_30] : memref<8x9xf32, #tpu.memory_space<vmem>>, vector<8x1xf32>
    %77 = vector.broadcast %76 : vector<8x1xf32> to vector<8x256xf32>
    %78 = arith.mulf %75, %77 : vector<8x256xf32>
    %c0_31 = arith.constant 0 : index
    %c127 = arith.constant 127 : index
    %79 = vector.load %arg11[%c0_31, %c127] : memref<8x512xf32, #tpu.memory_space<vmem>>, vector<8x256xf32>
    %c0_32 = arith.constant 0 : index
    %c3_33 = arith.constant 3 : index
    %80 = vector.load %arg3[%c0_32, %c3_33] : memref<8x9xf32, #tpu.memory_space<vmem>>, vector<8x1xf32>
    %81 = vector.broadcast %80 : vector<8x1xf32> to vector<8x256xf32>
    %82 = arith.mulf %79, %81 : vector<8x256xf32>
    %83 = arith.addf %78, %82 : vector<8x256xf32>
    %c0_34 = arith.constant 0 : index
    %c143 = arith.constant 143 : index
    %84 = vector.load %arg11[%c0_34, %c143] : memref<8x512xf32, #tpu.memory_space<vmem>>, vector<8x256xf32>
    %c0_35 = arith.constant 0 : index
    %c6 = arith.constant 6 : index
    %85 = vector.load %arg3[%c0_35, %c6] : memref<8x9xf32, #tpu.memory_space<vmem>>, vector<8x1xf32>
    %86 = vector.broadcast %85 : vector<8x1xf32> to vector<8x256xf32>
    %87 = arith.mulf %84, %86 : vector<8x256xf32>
    %88 = arith.addf %83, %87 : vector<8x256xf32>
    %89 = vector.broadcast %24 : vector<1x256xf32> to vector<8x256xf32>
    %90 = arith.mulf %88, %89 : vector<8x256xf32>
    %91 = arith.addf %74, %90 : vector<8x256xf32>
    %c0_36 = arith.constant 0 : index
    %c113 = arith.constant 113 : index
    %92 = vector.load %arg11[%c0_36, %c113] : memref<8x512xf32, #tpu.memory_space<vmem>>, vector<8x256xf32>
    %c0_37 = arith.constant 0 : index
    %c2_38 = arith.constant 2 : index
    %93 = vector.load %arg3[%c0_37, %c2_38] : memref<8x9xf32, #tpu.memory_space<vmem>>, vector<8x1xf32>
    %94 = vector.broadcast %93 : vector<8x1xf32> to vector<8x256xf32>
    %95 = arith.mulf %92, %94 : vector<8x256xf32>
    %c0_39 = arith.constant 0 : index
    %c129 = arith.constant 129 : index
    %96 = vector.load %arg11[%c0_39, %c129] : memref<8x512xf32, #tpu.memory_space<vmem>>, vector<8x256xf32>
    %c0_40 = arith.constant 0 : index
    %c5 = arith.constant 5 : index
    %97 = vector.load %arg3[%c0_40, %c5] : memref<8x9xf32, #tpu.memory_space<vmem>>, vector<8x1xf32>
    %98 = vector.broadcast %97 : vector<8x1xf32> to vector<8x256xf32>
    %99 = arith.mulf %96, %98 : vector<8x256xf32>
    %100 = arith.addf %95, %99 : vector<8x256xf32>
    %c0_41 = arith.constant 0 : index
    %c145 = arith.constant 145 : index
    %101 = vector.load %arg11[%c0_41, %c145] : memref<8x512xf32, #tpu.memory_space<vmem>>, vector<8x256xf32>
    %c0_42 = arith.constant 0 : index
    %c8 = arith.constant 8 : index
    %102 = vector.load %arg3[%c0_42, %c8] : memref<8x9xf32, #tpu.memory_space<vmem>>, vector<8x1xf32>
    %103 = vector.broadcast %102 : vector<8x1xf32> to vector<8x256xf32>
    %104 = arith.mulf %101, %103 : vector<8x256xf32>
    %105 = arith.addf %100, %104 : vector<8x256xf32>
    %106 = vector.broadcast %28 : vector<1x256xf32> to vector<8x256xf32>
    %107 = arith.mulf %105, %106 : vector<8x256xf32>
    %108 = arith.addf %91, %107 : vector<8x256xf32>
    %c0_43 = arith.constant 0 : index
    %c0_44 = arith.constant 0 : index
    %109 = vector.load %arg5[%c0_43, %c0_44] : memref<8x2xf32, #tpu.memory_space<vmem>>, vector<8x2xf32>
    %cst_45 = arith.constant dense<0.000000e+00> : vector<8xf32>
    %110 = vector.multi_reduction <add>, %108, %cst_45 [1] : vector<8x256xf32> to vector<8xf32>
    %111 = vector.shape_cast %110 : vector<8xf32> to vector<8x1xf32>
    %112 = vector.broadcast %111 : vector<8x1xf32> to vector<8x2xf32>
    %113 = arith.mulf %112, %109 : vector<8x2xf32>
    %cst_46 = arith.constant dense<0.000000e+00> : vector<2xf32>
    %114 = vector.multi_reduction <add>, %113, %cst_46 [0] : vector<8x2xf32> to vector<2xf32>
    %115 = vector.shape_cast %114 : vector<2xf32> to vector<1x2xf32>
    %116 = vector.broadcast %115 : vector<1x2xf32> to vector<8x2xf32>
    %117 = arith.mulf %116, %109 : vector<8x2xf32>
    %cst_47 = arith.constant dense<0.000000e+00> : vector<8xf32>
    %118 = vector.multi_reduction <add>, %117, %cst_47 [1] : vector<8x2xf32> to vector<8xf32>
    %119 = vector.shape_cast %118 : vector<8xf32> to vector<8x1xf32>
    %cst_48 = arith.constant 9.765625E-4 : f32
    %120 = vector.broadcast %cst_48 : f32 to vector<8x1xf32>
    %121 = arith.mulf %119, %120 : vector<8x1xf32>
    %122 = vector.broadcast %121 : vector<8x1xf32> to vector<8x256xf32>
    %123 = arith.subf %108, %122 : vector<8x256xf32>
    %124 = arith.mulf %123, %123 : vector<8x256xf32>
    %cst_49 = arith.constant dense<0.000000e+00> : vector<8xf32>
    %125 = vector.multi_reduction <add>, %124, %cst_49 [1] : vector<8x256xf32> to vector<8xf32>
    %126 = vector.shape_cast %125 : vector<8xf32> to vector<8x1xf32>
    %127 = vector.broadcast %126 : vector<8x1xf32> to vector<8x2xf32>
    %128 = arith.mulf %127, %109 : vector<8x2xf32>
    %cst_50 = arith.constant dense<0.000000e+00> : vector<2xf32>
    %129 = vector.multi_reduction <add>, %128, %cst_50 [0] : vector<8x2xf32> to vector<2xf32>
    %130 = vector.shape_cast %129 : vector<2xf32> to vector<1x2xf32>
    %131 = vector.broadcast %130 : vector<1x2xf32> to vector<8x2xf32>
    %132 = arith.mulf %131, %109 : vector<8x2xf32>
    %cst_51 = arith.constant dense<0.000000e+00> : vector<8xf32>
    %133 = vector.multi_reduction <add>, %132, %cst_51 [1] : vector<8x2xf32> to vector<8xf32>
    %134 = vector.shape_cast %133 : vector<8xf32> to vector<8x1xf32>
    %cst_52 = arith.constant 9.765625E-4 : f32
    %135 = vector.broadcast %cst_52 : f32 to vector<8x1xf32>
    %136 = arith.mulf %134, %135 : vector<8x1xf32>
    %cst_53 = arith.constant 9.99999974E-6 : f32
    %137 = vector.broadcast %cst_53 : f32 to vector<8x1xf32>
    %138 = arith.addf %136, %137 : vector<8x1xf32>
    %139 = math.rsqrt %138 : vector<8x1xf32>
    %c0_54 = arith.constant 0 : index
    %c2_55 = arith.constant 2 : index
    %140 = vector.load %arg4[%c0_54, %c2_55] : memref<8x4xf32, #tpu.memory_space<vmem>>, vector<8x1xf32>
    %141 = arith.mulf %139, %140 : vector<8x1xf32>
    %142 = vector.broadcast %141 : vector<8x1xf32> to vector<8x256xf32>
    %143 = arith.mulf %123, %142 : vector<8x256xf32>
    %c0_56 = arith.constant 0 : index
    %c3_57 = arith.constant 3 : index
    %144 = vector.load %arg4[%c0_56, %c3_57] : memref<8x4xf32, #tpu.memory_space<vmem>>, vector<8x1xf32>
    %145 = vector.broadcast %144 : vector<8x1xf32> to vector<8x256xf32>
    %146 = arith.addf %143, %145 : vector<8x256xf32>
    %cst_58 = arith.constant 0.000000e+00 : f32
    %147 = vector.broadcast %cst_58 : f32 to vector<8x256xf32>
    %148 = arith.cmpf oge, %146, %147 : vector<8x256xf32>
    %cst_59 = arith.constant 0.00999999977 : f32
    %149 = vector.broadcast %cst_59 : f32 to vector<8x256xf32>
    %150 = arith.mulf %149, %146 : vector<8x256xf32>
    %151 = arith.select %148, %146, %150 : vector<8x256xi1>, vector<8x256xf32>
    %c0_60 = arith.constant 0 : index
    %c0_61 = arith.constant 0 : index
    %c0_62 = arith.constant 0 : index
    %152 = vector.load %arg10[%c0_60, %c0_61, %c0_62] : memref<1x8x256xf32, #tpu.memory_space<vmem>>, vector<1x8x256xf32>
    %153 = vector.shape_cast %152 : vector<1x8x256xf32> to vector<8x256xf32>
    %154 = vector.shape_cast %151 : vector<8x256xf32> to vector<1x8x256xf32>
    tpu.vector_store %arg10[%c0_60, %c0_61, %c0_62], %154 {strides = array<i32>} : memref<1x8x256xf32, #tpu.memory_space<vmem>>, vector<1x8x256xf32>,
    %c0_63 = arith.constant 0 : index
    %c0_64 = arith.constant 0 : index
    %c0_65 = arith.constant 0 : index
    %155 = vector.load %arg10[%c0_63, %c0_64, %c0_65] : memref<1x8x256xf32, #tpu.memory_space<vmem>>, vector<1x8x256xf32>
    %156 = vector.shape_cast %155 : vector<1x8x256xf32> to vector<8x256xf32>
    %c0_66 = arith.constant 0 : index
    %c0_67 = arith.constant 0 : index
    %157 = vector.load %arg6[%c0_66, %c0_67] : memref<8x8xf32, #tpu.memory_space<vmem>>, vector<8x8xf32>
    %cst_68 = arith.constant dense<0.000000e+00> : vector<8x256xf32>
    %158 = tpu.matmul %157, %156, %cst_68 {dimension_numbers = #tpu.dot_dimension_numbers<[1], [0], [0], [1], [0, 0, 1, 1], [], []>} : vector<8x8xf32>, vector<8x256xf32>, vector<8x256xf32> -> vector<8x256xf32>
    %c0_69 = arith.constant 0 : index
    %c0_70 = arith.constant 0 : index
    %159 = vector.load %arg8[%c0_69, %c0_70] : memref<8x4xf32, #tpu.memory_space<vmem>>, vector<8x1xf32>
    %160 = vector.broadcast %159 : vector<8x1xf32> to vector<8x256xf32>
    %161 = arith.addf %158, %160 : vector<8x256xf32>
    %c0_71 = arith.constant 0 : index
    %c128_72 = arith.constant 128 : index
    %162 = vector.load %arg11[%c0_71, %c128_72] : memref<8x512xf32, #tpu.memory_space<vmem>>, vector<8x256xf32>
    tpu.vector_store %arg11[%c0_71, %c128_72], %161 {strides = array<i32>} : memref<8x512xf32, #tpu.memory_space<vmem>>, vector<8x256xf32>,
    %c0_73 = arith.constant 0 : index
    %c1_74 = arith.constant 1 : index
    %163 = vector.load %arg8[%c0_73, %c1_74] : memref<8x4xf32, #tpu.memory_space<vmem>>, vector<8x1xf32>
    %c0_75 = arith.constant 0 : index
    %c112_76 = arith.constant 112 : index
    %164 = vector.load %arg11[%c0_75, %c112_76] : memref<8x512xf32, #tpu.memory_space<vmem>>, vector<8x256xf32>
    %c0_77 = arith.constant 0 : index
    %c1_78 = arith.constant 1 : index
    %165 = vector.load %arg7[%c0_77, %c1_78] : memref<8x9xf32, #tpu.memory_space<vmem>>, vector<8x1xf32>
    %166 = vector.broadcast %165 : vector<8x1xf32> to vector<8x256xf32>
    %167 = arith.mulf %164, %166 : vector<8x256xf32>
    %c0_79 = arith.constant 0 : index
    %c128_80 = arith.constant 128 : index
    %168 = vector.load %arg11[%c0_79, %c128_80] : memref<8x512xf32, #tpu.memory_space<vmem>>, vector<8x256xf32>
    %c0_81 = arith.constant 0 : index
    %c4_82 = arith.constant 4 : index
    %169 = vector.load %arg7[%c0_81, %c4_82] : memref<8x9xf32, #tpu.memory_space<vmem>>, vector<8x1xf32>
    %170 = vector.broadcast %169 : vector<8x1xf32> to vector<8x256xf32>
    %171 = arith.mulf %168, %170 : vector<8x256xf32>
    %172 = arith.addf %167, %171 : vector<8x256xf32>
    %c0_83 = arith.constant 0 : index
    %c144_84 = arith.constant 144 : index
    %173 = vector.load %arg11[%c0_83, %c144_84] : memref<8x512xf32, #tpu.memory_space<vmem>>, vector<8x256xf32>
    %c0_85 = arith.constant 0 : index
    %c7_86 = arith.constant 7 : index
    %174 = vector.load %arg7[%c0_85, %c7_86] : memref<8x9xf32, #tpu.memory_space<vmem>>, vector<8x1xf32>
    %175 = vector.broadcast %174 : vector<8x1xf32> to vector<8x256xf32>
    %176 = arith.mulf %173, %175 : vector<8x256xf32>
    %177 = arith.addf %172, %176 : vector<8x256xf32>
    %178 = vector.broadcast %163 : vector<8x1xf32> to vector<8x256xf32>
    %179 = arith.addf %178, %177 : vector<8x256xf32>
    %c0_87 = arith.constant 0 : index
    %c111_88 = arith.constant 111 : index
    %180 = vector.load %arg11[%c0_87, %c111_88] : memref<8x512xf32, #tpu.memory_space<vmem>>, vector<8x256xf32>
    %c0_89 = arith.constant 0 : index
    %c0_90 = arith.constant 0 : index
    %181 = vector.load %arg7[%c0_89, %c0_90] : memref<8x9xf32, #tpu.memory_space<vmem>>, vector<8x1xf32>
    %182 = vector.broadcast %181 : vector<8x1xf32> to vector<8x256xf32>
    %183 = arith.mulf %180, %182 : vector<8x256xf32>
    %c0_91 = arith.constant 0 : index
    %c127_92 = arith.constant 127 : index
    %184 = vector.load %arg11[%c0_91, %c127_92] : memref<8x512xf32, #tpu.memory_space<vmem>>, vector<8x256xf32>
    %c0_93 = arith.constant 0 : index
    %c3_94 = arith.constant 3 : index
    %185 = vector.load %arg7[%c0_93, %c3_94] : memref<8x9xf32, #tpu.memory_space<vmem>>, vector<8x1xf32>
    %186 = vector.broadcast %185 : vector<8x1xf32> to vector<8x256xf32>
    %187 = arith.mulf %184, %186 : vector<8x256xf32>
    %188 = arith.addf %183, %187 : vector<8x256xf32>
    %c0_95 = arith.constant 0 : index
    %c143_96 = arith.constant 143 : index
    %189 = vector.load %arg11[%c0_95, %c143_96] : memref<8x512xf32, #tpu.memory_space<vmem>>, vector<8x256xf32>
    %c0_97 = arith.constant 0 : index
    %c6_98 = arith.constant 6 : index
    %190 = vector.load %arg7[%c0_97, %c6_98] : memref<8x9xf32, #tpu.memory_space<vmem>>, vector<8x1xf32>
    %191 = vector.broadcast %190 : vector<8x1xf32> to vector<8x256xf32>
    %192 = arith.mulf %189, %191 : vector<8x256xf32>
    %193 = arith.addf %188, %192 : vector<8x256xf32>
    %194 = vector.broadcast %24 : vector<1x256xf32> to vector<8x256xf32>
    %195 = arith.mulf %193, %194 : vector<8x256xf32>
    %196 = arith.addf %179, %195 : vector<8x256xf32>
    %c0_99 = arith.constant 0 : index
    %c113_100 = arith.constant 113 : index
    %197 = vector.load %arg11[%c0_99, %c113_100] : memref<8x512xf32, #tpu.memory_space<vmem>>, vector<8x256xf32>
    %c0_101 = arith.constant 0 : index
    %c2_102 = arith.constant 2 : index
    %198 = vector.load %arg7[%c0_101, %c2_102] : memref<8x9xf32, #tpu.memory_space<vmem>>, vector<8x1xf32>
    %199 = vector.broadcast %198 : vector<8x1xf32> to vector<8x256xf32>
    %200 = arith.mulf %197, %199 : vector<8x256xf32>
    %c0_103 = arith.constant 0 : index
    %c129_104 = arith.constant 129 : index
    %201 = vector.load %arg11[%c0_103, %c129_104] : memref<8x512xf32, #tpu.memory_space<vmem>>, vector<8x256xf32>
    %c0_105 = arith.constant 0 : index
    %c5_106 = arith.constant 5 : index
    %202 = vector.load %arg7[%c0_105, %c5_106] : memref<8x9xf32, #tpu.memory_space<vmem>>, vector<8x1xf32>
    %203 = vector.broadcast %202 : vector<8x1xf32> to vector<8x256xf32>
    %204 = arith.mulf %201, %203 : vector<8x256xf32>
    %205 = arith.addf %200, %204 : vector<8x256xf32>
    %c0_107 = arith.constant 0 : index
    %c145_108 = arith.constant 145 : index
    %206 = vector.load %arg11[%c0_107, %c145_108] : memref<8x512xf32, #tpu.memory_space<vmem>>, vector<8x256xf32>
    %c0_109 = arith.constant 0 : index
    %c8_110 = arith.constant 8 : index
    %207 = vector.load %arg7[%c0_109, %c8_110] : memref<8x9xf32, #tpu.memory_space<vmem>>, vector<8x1xf32>
    %208 = vector.broadcast %207 : vector<8x1xf32> to vector<8x256xf32>
    %209 = arith.mulf %206, %208 : vector<8x256xf32>
    %210 = arith.addf %205, %209 : vector<8x256xf32>
    %211 = vector.broadcast %28 : vector<1x256xf32> to vector<8x256xf32>
    %212 = arith.mulf %210, %211 : vector<8x256xf32>
    %213 = arith.addf %196, %212 : vector<8x256xf32>
    %c0_111 = arith.constant 0 : index
    %c0_112 = arith.constant 0 : index
    %214 = vector.load %arg9[%c0_111, %c0_112] : memref<8x2xf32, #tpu.memory_space<vmem>>, vector<8x2xf32>
    %cst_113 = arith.constant dense<0.000000e+00> : vector<8xf32>
    %215 = vector.multi_reduction <add>, %213, %cst_113 [1] : vector<8x256xf32> to vector<8xf32>
    %216 = vector.shape_cast %215 : vector<8xf32> to vector<8x1xf32>
    %217 = vector.broadcast %216 : vector<8x1xf32> to vector<8x2xf32>
    %218 = arith.mulf %217, %214 : vector<8x2xf32>
    %cst_114 = arith.constant dense<0.000000e+00> : vector<2xf32>
    %219 = vector.multi_reduction <add>, %218, %cst_114 [0] : vector<8x2xf32> to vector<2xf32>
    %220 = vector.shape_cast %219 : vector<2xf32> to vector<1x2xf32>
    %221 = vector.broadcast %220 : vector<1x2xf32> to vector<8x2xf32>
    %222 = arith.mulf %221, %214 : vector<8x2xf32>
    %cst_115 = arith.constant dense<0.000000e+00> : vector<8xf32>
    %223 = vector.multi_reduction <add>, %222, %cst_115 [1] : vector<8x2xf32> to vector<8xf32>
    %224 = vector.shape_cast %223 : vector<8xf32> to vector<8x1xf32>
    %cst_116 = arith.constant 9.765625E-4 : f32
    %225 = vector.broadcast %cst_116 : f32 to vector<8x1xf32>
    %226 = arith.mulf %224, %225 : vector<8x1xf32>
    %227 = vector.broadcast %226 : vector<8x1xf32> to vector<8x256xf32>
    %228 = arith.subf %213, %227 : vector<8x256xf32>
    %229 = arith.mulf %228, %228 : vector<8x256xf32>
    %cst_117 = arith.constant dense<0.000000e+00> : vector<8xf32>
    %230 = vector.multi_reduction <add>, %229, %cst_117 [1] : vector<8x256xf32> to vector<8xf32>
    %231 = vector.shape_cast %230 : vector<8xf32> to vector<8x1xf32>
    %232 = vector.broadcast %231 : vector<8x1xf32> to vector<8x2xf32>
    %233 = arith.mulf %232, %214 : vector<8x2xf32>
    %cst_118 = arith.constant dense<0.000000e+00> : vector<2xf32>
    %234 = vector.multi_reduction <add>, %233, %cst_118 [0] : vector<8x2xf32> to vector<2xf32>
    %235 = vector.shape_cast %234 : vector<2xf32> to vector<1x2xf32>
    %236 = vector.broadcast %235 : vector<1x2xf32> to vector<8x2xf32>
    %237 = arith.mulf %236, %214 : vector<8x2xf32>
    %cst_119 = arith.constant dense<0.000000e+00> : vector<8xf32>
    %238 = vector.multi_reduction <add>, %237, %cst_119 [1] : vector<8x2xf32> to vector<8xf32>
    %239 = vector.shape_cast %238 : vector<8xf32> to vector<8x1xf32>
    %cst_120 = arith.constant 9.765625E-4 : f32
    %240 = vector.broadcast %cst_120 : f32 to vector<8x1xf32>
    %241 = arith.mulf %239, %240 : vector<8x1xf32>
    %cst_121 = arith.constant 9.99999974E-6 : f32
    %242 = vector.broadcast %cst_121 : f32 to vector<8x1xf32>
    %243 = arith.addf %241, %242 : vector<8x1xf32>
    %244 = math.rsqrt %243 : vector<8x1xf32>
    %c0_122 = arith.constant 0 : index
    %c2_123 = arith.constant 2 : index
    %245 = vector.load %arg8[%c0_122, %c2_123] : memref<8x4xf32, #tpu.memory_space<vmem>>, vector<8x1xf32>
    %246 = arith.mulf %244, %245 : vector<8x1xf32>
    %247 = vector.broadcast %246 : vector<8x1xf32> to vector<8x256xf32>
    %248 = arith.mulf %228, %247 : vector<8x256xf32>
    %c0_124 = arith.constant 0 : index
    %c3_125 = arith.constant 3 : index
    %249 = vector.load %arg8[%c0_124, %c3_125] : memref<8x4xf32, #tpu.memory_space<vmem>>, vector<8x1xf32>
    %250 = vector.broadcast %249 : vector<8x1xf32> to vector<8x256xf32>
    %251 = arith.addf %248, %250 : vector<8x256xf32>
    %cst_126 = arith.constant 0.000000e+00 : f32
    %252 = vector.broadcast %cst_126 : f32 to vector<8x256xf32>
    %253 = arith.cmpf oge, %251, %252 : vector<8x256xf32>
    %cst_127 = arith.constant 0.00999999977 : f32
    %254 = vector.broadcast %cst_127 : f32 to vector<8x256xf32>
    %255 = arith.mulf %254, %251 : vector<8x256xf32>
    %256 = arith.select %253, %251, %255 : vector<8x256xi1>, vector<8x256xf32>
    %c0_128 = arith.constant 0 : index
    %c0_129 = arith.constant 0 : index
    %c0_130 = arith.constant 0 : index
    %257 = vector.load %arg10[%c0_128, %c0_129, %c0_130] : memref<1x8x256xf32, #tpu.memory_space<vmem>>, vector<1x8x256xf32>
    %258 = vector.shape_cast %257 : vector<1x8x256xf32> to vector<8x256xf32>
    %259 = arith.addf %258, %256 : vector<8x256xf32>
    %c0_131 = arith.constant 0 : index
    %c0_132 = arith.constant 0 : index
    %c0_133 = arith.constant 0 : index
    %260 = vector.load %arg10[%c0_131, %c0_132, %c0_133] : memref<1x8x256xf32, #tpu.memory_space<vmem>>, vector<1x8x256xf32>
    %261 = vector.shape_cast %260 : vector<1x8x256xf32> to vector<8x256xf32>
    %262 = vector.shape_cast %259 : vector<8x256xf32> to vector<1x8x256xf32>
    tpu.vector_store %arg10[%c0_131, %c0_132, %c0_133], %262 {strides = array<i32>} : memref<1x8x256xf32, #tpu.memory_space<vmem>>, vector<1x8x256xf32>,
    return
  }
  func.func @transform_0(%arg0: i32) -> (i32, i32, i32) {
    %c0_i32 = arith.constant 0 : i32
    %c0_i32_0 = arith.constant 0 : i32
    %c0_i32_1 = arith.constant 0 : i32
    return %arg0, %c0_i32, %c0_i32_0 : i32, i32, i32
  }
  func.func @transform_1(%arg0: i32) -> (i32, i32) {
    %c0_i32 = arith.constant 0 : i32
    %c0_i32_0 = arith.constant 0 : i32
    %c0_i32_1 = arith.constant 0 : i32
    return %c0_i32, %c0_i32_0 : i32, i32
  }
  func.func @transform_2(%arg0: i32) -> (i32, i32) {
    %c0_i32 = arith.constant 0 : i32
    %c0_i32_0 = arith.constant 0 : i32
    %c0_i32_1 = arith.constant 0 : i32
    return %c0_i32, %c0_i32_0 : i32, i32
  }
  func.func @transform_3(%arg0: i32) -> (i32, i32) {
    %c0_i32 = arith.constant 0 : i32
    %c0_i32_0 = arith.constant 0 : i32
    %c0_i32_1 = arith.constant 0 : i32
    return %c0_i32, %c0_i32_0 : i32, i32
  }
  func.func @transform_4(%arg0: i32) -> (i32, i32) {
    %c0_i32 = arith.constant 0 : i32
    %c0_i32_0 = arith.constant 0 : i32
    %c0_i32_1 = arith.constant 0 : i32
    return %c0_i32, %c0_i32_0 : i32, i32
  }
  func.func @transform_5(%arg0: i32) -> (i32, i32) {
    %c0_i32 = arith.constant 0 : i32
    %c0_i32_0 = arith.constant 0 : i32
    %c0_i32_1 = arith.constant 0 : i32
    return %c0_i32, %c0_i32_0 : i32, i32
  }
  func.func @transform_6(%arg0: i32) -> (i32, i32) {
    %c0_i32 = arith.constant 0 : i32
    %c0_i32_0 = arith.constant 0 : i32
    %c0_i32_1 = arith.constant 0 : i32
    return %c0_i32, %c0_i32_0 : i32, i32
  }
  func.func @transform_7(%arg0: i32) -> (i32, i32) {
    %c0_i32 = arith.constant 0 : i32
    %c0_i32_0 = arith.constant 0 : i32
    %c0_i32_1 = arith.constant 0 : i32
    return %c0_i32, %c0_i32_0 : i32, i32
  }
  func.func @transform_8(%arg0: i32) -> (i32, i32) {
    %c0_i32 = arith.constant 0 : i32
    %c0_i32_0 = arith.constant 0 : i32
    %c0_i32_1 = arith.constant 0 : i32
    return %c0_i32, %c0_i32_0 : i32, i32
  }
  func.func @transform_9(%arg0: i32) -> (i32, i32, i32) {
    %c0_i32 = arith.constant 0 : i32
    %c0_i32_0 = arith.constant 0 : i32
    %c0_i32_1 = arith.constant 0 : i32
    return %arg0, %c0_i32, %c0_i32_0 : i32, i32, i32
  }
}

</mosaic_0001>

<llo_original>
// kernel: unet_block_dw_cf_res.1
$region0: #{unet_block_dw_cf_res.1}
  #allocation0 [shape = 'u32[]', space=smem, size = 0x4, offset = 0x4, fixed_abs, tag = 'smem constant byte address 0x4 - core index']
  #allocation1 [shape = 'u32[72,128]{1,0:T(1,128)}', space=vmem, size = 0x9000, scoped, tag = 'internal scratch']
  #allocation2 [shape = 'f32[8,512]{1,0:T(8,128)}', space=vmem, size = 0x4000, scoped, tag = 'scratch operand']
  %s0 = inlined_call_operand.vmem [shape: f32[2,4,256], index: 0, kind: input, shape index: {}]
  %s1 = inlined_call_operand.vmem [shape: f32[8,4], index: 1, kind: input, shape index: {}]
  %s2 = inlined_call_operand.vmem [shape: f32[8,9], index: 2, kind: input, shape index: {}]
  %s3 = inlined_call_operand.vmem [shape: f32[8,4], index: 3, kind: input, shape index: {}]
  %s4 = inlined_call_operand.vmem [shape: f32[8,2], index: 4, kind: input, shape index: {}]
  %s5 = inlined_call_operand.vmem [shape: f32[8,8], index: 5, kind: input, shape index: {}]
  %s6 = inlined_call_operand.vmem [shape: f32[8,9], index: 6, kind: input, shape index: {}]
  %s7 = inlined_call_operand.vmem [shape: f32[8,4], index: 7, kind: input, shape index: {}]
  %s8 = inlined_call_operand.vmem [shape: f32[8,2], index: 8, kind: input, shape index: {}]
  %s9 = inlined_call_operand.vmem [shape: f32[2,8,256], index: 9, kind: output, shape index: {}]
  %s10 = sld [smem:[#allocation0]]
  $region69: #{unet_block_dw_cf_res.1} parent=0
    _
  %s12 = ssub.s32 1, %s10
  %s13 = scalar_select 0, %s12, %s10
  loop: start=0, step=1, limit=4
  $region2: #{unet_block_dw_cf_res.1} parent=0 // loop_pre_header
    _
  $region3: #{unet_block_dw_cf_res.1} parent=0 // loop_header
    %s15 = sphi 0, %s19
    %p16 = scmp.ge.s32.totalorder %s15, 4
    %s25 = sphi 0, %s27
    %s28 = sphi 0, %s25
    %s29 = sphi 0, %s28
    %s45 = sphi 0, %s29
    %s49 = sphi 0, %s49
    %s51 = sphi 0, %s49
    %s52 = sphi 0, %s51
    %s66 = sphi 0, %s52
    %s70 = sphi 0, %s70
    %s72 = sphi 0, %s70
    %s73 = sphi 0, %s72
    %s87 = sphi 0, %s73
    %s91 = sphi 0, %s91
    %s93 = sphi 0, %s91
    %s94 = sphi 0, %s93
    %s108 = sphi 0, %s94
    %s112 = sphi 0, %s112
    %s114 = sphi 0, %s112
    %s115 = sphi 0, %s114
    %s129 = sphi 0, %s115
    %s133 = sphi 0, %s133
    %s135 = sphi 0, %s133
    %s136 = sphi 0, %s135
    %s150 = sphi 0, %s136
    %s154 = sphi 0, %s154
    %s156 = sphi 0, %s154
    %s157 = sphi 0, %s156
    %s171 = sphi 0, %s157
    %s175 = sphi 0, %s175
    %s177 = sphi 0, %s175
    %s178 = sphi 0, %s177
    %s192 = sphi 0, %s178
    %s196 = sphi 0, %s196
    %s198 = sphi 0, %s196
    %s199 = sphi 0, %s198
    %s213 = sphi 0, %s199
    %s219 = sphi 0, %s221
    %s222 = sphi 0, %s219
    %s223 = sphi 0, %s222
    %s239 = sphi 0, %s223
  $region4: #{unet_block_dw_cf_res.1} parent=0 // loop_header_branch
    %18 = sbr.rel (%p16) target = $region8
  $region5: #{unet_block_dw_cf_res.1} parent=0 // loop_body
    %s20 = ssub.s32 %s15, 1
    %s21 = ssub.s32 %s15, 2
    %s22 = sadd.s32 %s15, 1
    %s23 = ssub.s32 %s15, %s22
    %p24 = scmp.eq.s32.totalorder %s23, 0
    %s26 = sadd.s32 %s25, 1
    %s27 = scalar_select %p24, %s25, %s26
    %p30 = pneg %p24
    %p31 = scmp.eq.s32.totalorder %s15, 1
    %p32 = por %p30, %p31
    %p33 = scmp.ne.s32.totalorder %s25, %s28
    %p34 = scmp.eq.s32.totalorder %s15, 0
    %p35 = por %p33, %p34
    %p36 = scmp.ne.s32.totalorder %s25, %s28
    %p37 = scmp.eq.s32.totalorder %s20, 1
    %p38 = por %p36, %p37
    %p39 = scmp.ne.s32.totalorder %s28, %s29
    %p40 = scmp.eq.s32.totalorder %s20, 0
    %p41 = por %p39, %p40
    %p42 = scmp.ne.s32.totalorder %s28, %s29
    %p43 = scmp.eq.s32.totalorder %s21, 1
    %p44 = por %p42, %p43
    %p46 = scmp.ne.s32.totalorder %s29, %s45
    %p47 = scmp.eq.s32.totalorder %s21, 0
    %p48 = por %p46, %p47
    %s50 = sadd.s32 %s49, 1
    %p53 = scmp.eq.s32.totalorder %s15, 1
    %p54 = scmp.ne.s32.totalorder %s49, %s51
    %p55 = scmp.eq.s32.totalorder %s15, 0
    %p56 = por %p54, %p55
    %p57 = scmp.ne.s32.totalorder %s49, %s51
    %p58 = scmp.eq.s32.totalorder %s20, 1
    %p59 = por %p57, %p58
    %p60 = scmp.ne.s32.totalorder %s51, %s52
    %p61 = scmp.eq.s32.totalorder %s20, 0
    %p62 = por %p60, %p61
    %p63 = scmp.ne.s32.totalorder %s51, %s52
    %p64 = scmp.eq.s32.totalorder %s21, 1
    %p65 = por %p63, %p64
    %p67 = scmp.ne.s32.totalorder %s52, %s66
    %p68 = scmp.eq.s32.totalorder %s21, 0
    %p69 = por %p67, %p68
    %s71 = sadd.s32 %s70, 1
    %p74 = scmp.eq.s32.totalorder %s15, 1
    %p75 = scmp.ne.s32.totalorder %s70, %s72
    %p76 = scmp.eq.s32.totalorder %s15, 0
    %p77 = por %p75, %p76
    %p78 = scmp.ne.s32.totalorder %s70, %s72
    %p79 = scmp.eq.s32.totalorder %s20, 1
    %p80 = por %p78, %p79
    %p81 = scmp.ne.s32.totalorder %s72, %s73
    %p82 = scmp.eq.s32.totalorder %s20, 0
    %p83 = por %p81, %p82
    %p84 = scmp.ne.s32.totalorder %s72, %s73
    %p85 = scmp.eq.s32.totalorder %s21, 1
    %p86 = por %p84, %p85
    %p88 = scmp.ne.s32.totalorder %s73, %s87
    %p89 = scmp.eq.s32.totalorder %s21, 0
    %p90 = por %p88, %p89
    %s92 = sadd.s32 %s91, 1
    %p95 = scmp.eq.s32.totalorder %s15, 1
    %p96 = scmp.ne.s32.totalorder %s91, %s93
    %p97 = scmp.eq.s32.totalorder %s15, 0
    %p98 = por %p96, %p97
    %p99 = scmp.ne.s32.totalorder %s91, %s93
    %p100 = scmp.eq.s32.totalorder %s20, 1
    %p101 = por %p99, %p100
    %p102 = scmp.ne.s32.totalorder %s93, %s94
    %p103 = scmp.eq.s32.totalorder %s20, 0
    %p104 = por %p102, %p103
    %p105 = scmp.ne.s32.totalorder %s93, %s94
    %p106 = scmp.eq.s32.totalorder %s21, 1
    %p107 = por %p105, %p106
    %p109 = scmp.ne.s32.totalorder %s94, %s108
    %p110 = scmp.eq.s32.totalorder %s21, 0
    %p111 = por %p109, %p110
    %s113 = sadd.s32 %s112, 1
    %p116 = scmp.eq.s32.totalorder %s15, 1
    %p117 = scmp.ne.s32.totalorder %s112, %s114
    %p118 = scmp.eq.s32.totalorder %s15, 0
    %p119 = por %p117, %p118
    %p120 = scmp.ne.s32.totalorder %s112, %s114
    %p121 = scmp.eq.s32.totalorder %s20, 1
    %p122 = por %p120, %p121
    %p123 = scmp.ne.s32.totalorder %s114, %s115
    %p124 = scmp.eq.s32.totalorder %s20, 0
    %p125 = por %p123, %p124
    %p126 = scmp.ne.s32.totalorder %s114, %s115
    %p127 = scmp.eq.s32.totalorder %s21, 1
    %p128 = por %p126, %p127
    %p130 = scmp.ne.s32.totalorder %s115, %s129
    %p131 = scmp.eq.s32.totalorder %s21, 0
    %p132 = por %p130, %p131
    %s134 = sadd.s32 %s133, 1
    %p137 = scmp.eq.s32.totalorder %s15, 1
    %p138 = scmp.ne.s32.totalorder %s133, %s135
    %p139 = scmp.eq.s32.totalorder %s15, 0
    %p140 = por %p138, %p139
    %p141 = scmp.ne.s32.totalorder %s133, %s135
    %p142 = scmp.eq.s32.totalorder %s20, 1
    %p143 = por %p141, %p142
    %p144 = scmp.ne.s32.totalorder %s135, %s136
    %p145 = scmp.eq.s32.totalorder %s20, 0
    %p146 = por %p144, %p145
    %p147 = scmp.ne.s32.totalorder %s135, %s136
    %p148 = scmp.eq.s32.totalorder %s21, 1
    %p149 = por %p147, %p148
    %p151 = scmp.ne.s32.totalorder %s136, %s150
    %p152 = scmp.eq.s32.totalorder %s21, 0
    %p153 = por %p151, %p152
    %s155 = sadd.s32 %s154, 1
    %p158 = scmp.eq.s32.totalorder %s15, 1
    %p159 = scmp.ne.s32.totalorder %s154, %s156
    %p160 = scmp.eq.s32.totalorder %s15, 0
    %p161 = por %p159, %p160
    %p162 = scmp.ne.s32.totalorder %s154, %s156
    %p163 = scmp.eq.s32.totalorder %s20, 1
    %p164 = por %p162, %p163
    %p165 = scmp.ne.s32.totalorder %s156, %s157
    %p166 = scmp.eq.s32.totalorder %s20, 0
    %p167 = por %p165, %p166
    %p168 = scmp.ne.s32.totalorder %s156, %s157
    %p169 = scmp.eq.s32.totalorder %s21, 1
    %p170 = por %p168, %p169
    %p172 = scmp.ne.s32.totalorder %s157, %s171
    %p173 = scmp.eq.s32.totalorder %s21, 0
    %p174 = por %p172, %p173
    %s176 = sadd.s32 %s175, 1
    %p179 = scmp.eq.s32.totalorder %s15, 1
    %p180 = scmp.ne.s32.totalorder %s175, %s177
    %p181 = scmp.eq.s32.totalorder %s15, 0
    %p182 = por %p180, %p181
    %p183 = scmp.ne.s32.totalorder %s175, %s177
    %p184 = scmp.eq.s32.totalorder %s20, 1
    %p185 = por %p183, %p184
    %p186 = scmp.ne.s32.totalorder %s177, %s178
    %p187 = scmp.eq.s32.totalorder %s20, 0
    %p188 = por %p186, %p187
    %p189 = scmp.ne.s32.totalorder %s177, %s178
    %p190 = scmp.eq.s32.totalorder %s21, 1
    %p191 = por %p189, %p190
    %p193 = scmp.ne.s32.totalorder %s178, %s192
    %p194 = scmp.eq.s32.totalorder %s21, 0
    %p195 = por %p193, %p194
    %s197 = sadd.s32 %s196, 1
    %p200 = scmp.eq.s32.totalorder %s15, 1
    %p201 = scmp.ne.s32.totalorder %s196, %s198
    %p202 = scmp.eq.s32.totalorder %s15, 0
    %p203 = por %p201, %p202
    %p204 = scmp.ne.s32.totalorder %s196, %s198
    %p205 = scmp.eq.s32.totalorder %s20, 1
    %p206 = por %p204, %p205
    %p207 = scmp.ne.s32.totalorder %s198, %s199
    %p208 = scmp.eq.s32.totalorder %s20, 0
    %p209 = por %p207, %p208
    %p210 = scmp.ne.s32.totalorder %s198, %s199
    %p211 = scmp.eq.s32.totalorder %s21, 1
    %p212 = por %p210, %p211
    %p214 = scmp.ne.s32.totalorder %s199, %s213
    %p215 = scmp.eq.s32.totalorder %s21, 0
    %p216 = por %p214, %p215
    %s217 = ssub.s32 %s15, %s22
    %p218 = scmp.eq.s32.totalorder %s217, 0
    %s220 = sadd.s32 %s219, 1
    %s221 = scalar_select %p218, %s219, %s220
    %p224 = pneg %p218
    %p225 = scmp.eq.s32.totalorder %s15, 1
    %p226 = por %p224, %p225
    %p227 = scmp.ne.s32.totalorder %s219, %s222
    %p228 = scmp.eq.s32.totalorder %s15, 0
    %p229 = por %p227, %p228
    %p230 = scmp.ne.s32.totalorder %s219, %s222
    %p231 = scmp.eq.s32.totalorder %s20, 1
    %p232 = por %p230, %p231
    %p233 = scmp.ne.s32.totalorder %s222, %s223
    %p234 = scmp.eq.s32.totalorder %s20, 0
    %p235 = por %p233, %p234
    %p236 = scmp.ne.s32.totalorder %s222, %s223
    %p237 = scmp.eq.s32.totalorder %s21, 1
    %p238 = por %p236, %p237
    %p240 = scmp.ne.s32.totalorder %s223, %s239
    %p241 = scmp.eq.s32.totalorder %s21, 0
    %p242 = por %p240, %p241
    %p243 = scmp.le.s32.totalorder 1, %s15
    %p244 = scmp.lt.s32.totalorder %s15, 3
    %p245 = pnand %p243, %p244
    %p246 = pneg %p245
    // Predicated region
    $region9: #{unet_block_dw_cf_res.1} parent=5 // pred_check
      _
    $region10: #{unet_block_dw_cf_res.1} parent=5 // pred_check_branch
      %248 = sbr.rel (%p245) target = $region12
    $region11: #{unet_block_dw_cf_res.1} parent=5 // pred_region
      %s249 = ssub.s32 %s15, 1
      // Predicated region
      $region13: #{unet_block_dw_cf_res.1} parent=11 // pred_check
        %p250 = pneg %p62
      $region14: #{unet_block_dw_cf_res.1} parent=11 // pred_check_branch
        %252 = sbr.rel (%p250) target = $region16
      $region15: #{unet_block_dw_cf_res.1} parent=11 // pred_region
        _
      $region16: #{unet_block_dw_cf_res.1} parent=11 // pred_fallthru
        _
      // Predicated region
      $region17: #{unet_block_dw_cf_res.1} parent=11 // pred_check
        %p253 = pneg %p83
      $region18: #{unet_block_dw_cf_res.1} parent=11 // pred_check_branch
        %255 = sbr.rel (%p253) target = $region20
      $region19: #{unet_block_dw_cf_res.1} parent=11 // pred_region
        _
      $region20: #{unet_block_dw_cf_res.1} parent=11 // pred_fallthru
        _
      // Predicated region
      $region21: #{unet_block_dw_cf_res.1} parent=11 // pred_check
        %p256 = pneg %p104
      $region22: #{unet_block_dw_cf_res.1} parent=11 // pred_check_branch
        %258 = sbr.rel (%p256) target = $region24
      $region23: #{unet_block_dw_cf_res.1} parent=11 // pred_region
        _
      $region24: #{unet_block_dw_cf_res.1} parent=11 // pred_fallthru
        _
      // Predicated region
      $region25: #{unet_block_dw_cf_res.1} parent=11 // pred_check
        %p259 = pneg %p125
      $region26: #{unet_block_dw_cf_res.1} parent=11 // pred_check_branch
        %261 = sbr.rel (%p259) target = $region28
      $region27: #{unet_block_dw_cf_res.1} parent=11 // pred_region
        _
      $region28: #{unet_block_dw_cf_res.1} parent=11 // pred_fallthru
        _
      // Predicated region
      $region29: #{unet_block_dw_cf_res.1} parent=11 // pred_check
        %p262 = pneg %p146
      $region30: #{unet_block_dw_cf_res.1} parent=11 // pred_check_branch
        %264 = sbr.rel (%p262) target = $region32
      $region31: #{unet_block_dw_cf_res.1} parent=11 // pred_region
        _
      $region32: #{unet_block_dw_cf_res.1} parent=11 // pred_fallthru
        _
      // Predicated region
      $region33: #{unet_block_dw_cf_res.1} parent=11 // pred_check
        %p265 = pneg %p167
      $region34: #{unet_block_dw_cf_res.1} parent=11 // pred_check_branch
        %267 = sbr.rel (%p265) target = $region36
      $region35: #{unet_block_dw_cf_res.1} parent=11 // pred_region
        _
      $region36: #{unet_block_dw_cf_res.1} parent=11 // pred_fallthru
        _
      // Predicated region
      $region37: #{unet_block_dw_cf_res.1} parent=11 // pred_check
        %p268 = pneg %p188
      $region38: #{unet_block_dw_cf_res.1} parent=11 // pred_check_branch
        %270 = sbr.rel (%p268) target = $region40
      $region39: #{unet_block_dw_cf_res.1} parent=11 // pred_region
        _
      $region40: #{unet_block_dw_cf_res.1} parent=11 // pred_fallthru
        _
      // Predicated region
      $region41: #{unet_block_dw_cf_res.1} parent=11 // pred_check
        %p271 = pneg %p209
      $region42: #{unet_block_dw_cf_res.1} parent=11 // pred_check_branch
        %273 = sbr.rel (%p271) target = $region44
      $region43: #{unet_block_dw_cf_res.1} parent=11 // pred_region
        _
      $region44: #{unet_block_dw_cf_res.1} parent=11 // pred_fallthru
        _
    $region12: #{unet_block_dw_cf_res.1} parent=5 // pred_fallthru
      _
    %p274 = scmp.lt.s32.totalorder %s15, 2
    // Predicated region
    $region45: #{unet_block_dw_cf_res.1} parent=5 // pred_check
      %p275 = pneg %p274
    $region46: #{unet_block_dw_cf_res.1} parent=5 // pred_check_branch
      %277 = sbr.rel (%p275) target = $region48
    $region47: #{unet_block_dw_cf_res.1} parent=5 // pred_region
      // Predicated region
      $region49: #{unet_block_dw_cf_res.1} parent=47 // pred_check
        %p278 = pneg %p35
      $region50: #{unet_block_dw_cf_res.1} parent=47 // pred_check_branch
        %280 = sbr.rel (%p278) target = $region52
      $region51: #{unet_block_dw_cf_res.1} parent=47 // pred_region
        %p281 = scmp.lt.s32.totalorder %s15, 1
        %s282 = scalar_select %p281, %s15, 1
        %s283 = smul.addr %s282, 2
        %s284 = smul.addr %s283, 4
        %s285 = scalar_lea.vmem %s0, %s284
      $region52: #{unet_block_dw_cf_res.1} parent=47 // pred_fallthru
        _
    $region48: #{unet_block_dw_cf_res.1} parent=5 // pred_fallthru
      _
    %p286 = scmp.le.s32.totalorder 1, %s15
    %p287 = scmp.lt.s32.totalorder %s15, 3
    %p288 = pnand %p286, %p287
    %p289 = pneg %p288
    // Predicated region
    $region53: #{unet_block_dw_cf_res.1} parent=5 // pred_check
      _
    $region54: #{unet_block_dw_cf_res.1} parent=5 // pred_check_branch
      %291 = sbr.rel (%p288) target = $region56
    $region55: #{unet_block_dw_cf_res.1} parent=5 // pred_region
      %s292 = ssub.s32 %s15, 1
      %p293 = scmp.lt.s32.totalorder %s20, 1
      %s294 = scalar_select %p293, %s20, 1
      %s295 = smul.addr %s294, 2
      %s296 = smul.addr %s295, 4
      %s297 = scalar_lea.vmem %s0, %s296
      %p298 = pneg %p41
      %p299 = pneg %p38
      %p300 = pneg %p62
      %p301 = pneg %p59
      %p302 = pneg %p83
      %p303 = pneg %p80
      %p304 = pneg %p104
      %p305 = pneg %p101
      %p306 = pneg %p125
      %p307 = pneg %p122
      %p308 = pneg %p146
      %p309 = pneg %p143
      %p310 = pneg %p167
      %p311 = pneg %p164
      %p312 = pneg %p188
      %p313 = pneg %p185
      %p314 = pneg %p209
      %p315 = pneg %p206
      %p316 = pneg %p235
      %p317 = pneg %p232
      %p318 = scmp.lt.s32.totalorder %s20, 1
      %s319 = scalar_select %p318, %s20, 1
      %s320 = smul.addr %s319, 2
      %s321 = smul.addr %s320, 8
      %s322 = scalar_lea.vmem %s9, %s321
      %p323 = scmp.lt.s32.totalorder %s20, 1
      %s324 = scalar_select %p323, %s20, 1
      %s325 = smul.addr %s324, 2
      %s326 = smul.addr %s325, 4
      %s327 = scalar_lea.vmem %s0, %s326
      %p328 = scmp.lt.s32.totalorder %s20, 1
      %s329 = scalar_select %p328, %s20, 1
      %s330 = smul.addr %s329, 2
      %s331 = smul.addr %s330, 8
      %s332 = scalar_lea.vmem %s9, %s331
      %333 = vst [vmem:[#allocation2] sm:$0xff] 0.0
      %334 = vst [vmem:[#allocation2 + $0x18] sm:$0xff] 0.0
      %v335 = vlaneseq
      %v336 = vand.u32 %v335, 127
      %v337 = vadd.s32 %v336, 128
      %vm338 = vcmp.lt.s32.totalorder %v336, 0
      %v339 = vsub.s32 0, %v336
      %v340 = vsel %vm338, %v339, %v336
      %v341 = vshrl.u32 %v340, 4
      %v342 = vand.u32 %v340, 15
      %v343 = vsub.s32 0, %v342
      %v344 = vsel %vm338, %v343, %v342
      %vm345 = vcmp.lt.s32.totalorder %v337, 0
      %v346 = vsub.s32 0, %v337
      %v347 = vsel %vm345, %v346, %v337
      %v348 = vshrl.u32 %v347, 4
      %v349 = vand.u32 %v347, 15
      %v350 = vsub.s32 0, %v349
      %v351 = vsel %vm345, %v350, %v349
      %vm352 = vcmp.ne.s32.totalorder %v344, 0
      %vm353 = vcmp.ne.s32.totalorder %v351, 0
      %vm354 = vcmp.lt.s32.totalorder %v344, 0
      %vm355 = vcmp.lt.s32.totalorder %v351, 0
      %vm356 = vmand %vm354, %vm352
      %vm357 = vmand %vm355, %vm353
      %v358 = vadd.s32 %v344, 16
      %v359 = vadd.s32 %v351, 16
      %v360 = vsel %vm356, %v358, %v344
      %v361 = vsel %vm357, %v359, %v351
      %vm362 = vcmp.ge.s32.totalorder %v360, 1
      %vm363 = vcmp.ge.s32.totalorder %v361, 1
      %v364 = vsel %vm362, 1, 0
      %v365 = vsel %vm363, 1, 0
      %v366 = vcvt.s32.f32 %v364
      %v367 = vcvt.s32.f32 %v365
      %vm368 = vcmp.le.s32.totalorder %v360, 14
      %vm369 = vcmp.le.s32.totalorder %v361, 14
      %v370 = vsel %vm368, 1, 0
      %v371 = vsel %vm369, 1, 0
      %v372 = vcvt.s32.f32 %v370
      %v373 = vcvt.s32.f32 %v371
      %v374 = vld [vmem:[%s327] sm:$0xff]
      %v375 = vld [vmem:[%s1] sm:$0xff]
      %377 = vset.pattern.permute.xlu0 0
      %378 = vperm.xlu0 %377, %v375
      %v379 = vpop.permute.xlu0 %378
      %v382 = vperm.slane %v374, 0
      %v383 = vperm.slane %v374, 4
      %v386 = vperm.slane %v382, 0
      %v387 = vperm.slane %v383, 0
      %v388 = vmul.f32 %v379, %v386
      %v389 = vmul.f32 %v379, %v387
      %390 = vset.pattern.permute.xlu0 1
      %391 = vperm.xlu0 %390, %v375
      %v392 = vpop.permute.xlu0 %391
      %v394 = vperm.slane %v374, 1
      %v395 = vperm.slane %v374, 5
      %v398 = vperm.slane %v394, 1
      %v399 = vperm.slane %v395, 1
      %v400 = vmul.f32 %v392, %v398
      %v401 = vmul.f32 %v392, %v399
      %v402 = vadd.f32 %v388, %v400
      %v403 = vadd.f32 %v389, %v401
      %404 = vset.pattern.permute.xlu0 2
      %405 = vperm.xlu0 %404, %v375
      %v406 = vpop.permute.xlu0 %405
      %v408 = vperm.slane %v374, 2
      %v409 = vperm.slane %v374, 6
      %v412 = vperm.slane %v408, 2
      %v413 = vperm.slane %v409, 2
      %v414 = vmul.f32 %v406, %v412
      %v415 = vmul.f32 %v406, %v413
      %v416 = vadd.f32 %v402, %v414
      %v417 = vadd.f32 %v403, %v415
      %418 = vset.pattern.permute.xlu0 3
      %419 = vperm.xlu0 %418, %v375
      %v420 = vpop.permute.xlu0 %419
      %v422 = vperm.slane %v374, 3
      %v423 = vperm.slane %v374, 7
      %v426 = vperm.slane %v422, 3
      %v427 = vperm.slane %v423, 3
      %v428 = vmul.f32 %v420, %v426
      %v429 = vmul.f32 %v420, %v427
      %v430 = vadd.f32 %v416, %v428
      %v431 = vadd.f32 %v417, %v429
      %v432 = vld [vmem:[%s3] sm:$0xff]
      %434 = vset.pattern.permute.xlu0 0
      %435 = vperm.xlu0 %434, %v432
      %v436 = vpop.permute.xlu0 %435
      %v438 = vadd.f32 %v430, %v436
      %v439 = vadd.f32 %v431, %v436
      %440 = vst [vmem:[#allocation2 + $0x8] sm:$0xff] %v438
      %441 = vst [vmem:[#allocation2 + $0x10] sm:$0xff] %v439
      %v442 = vld [vmem:[%s3] sm:$0xff]
      %v443 = vld [vmem:[#allocation2] sm:$0xff]
      %v444 = vld [vmem:[#allocation2 + $0x8] sm:$0xff]
      %v445 = vld [vmem:[#allocation2 + $0x10] sm:$0xff]
      %v446 = vld [vmem:[%s2] sm:$0xff]
      %448 = vset.pattern.permute.xlu0 1
      %449 = vperm.xlu0 %448, %v446
      %v450 = vpop.permute.xlu0 %449
      %v452 = vmul.f32 %v443, %v450
      %v453 = vmul.f32 %v444, %v450
      %v454 = vmul.f32 %v445, %v450
      %455 = vset.pattern.permute.xlu0 4
      %456 = vperm.xlu0 %455, %v446
      %v457 = vpop.permute.xlu0 %456
      %v459 = vmul.f32 %v444, %v457
      %v460 = vmul.f32 %v445, %v457
      %463 = vrot.lane.b32.xlu0 %v459, 112
      %v464 = vpop.permute.xlu0 %463
      %465 = vrot.lane.b32.xlu0 %v460, 112
      %v466 = vpop.permute.xlu0 %465
      %vm467 = vcmask 916480
      %v468 = vsel %vm467, %v464, %v466
      %v472 = vadd.f32 %v452, %v464
      %v473 = vadd.f32 %v453, %v468
      %v474 = vadd.f32 %v454, %v466
      %v475 = vld [vmem:[#allocation2 + $0x8] sm:$0xff]
      %v476 = vld [vmem:[#allocation2 + $0x10] sm:$0xff]
      %v477 = vld [vmem:[#allocation2 + $0x18] sm:$0xff]
      %478 = vset.pattern.permute.xlu0 7
      %479 = vperm.xlu0 %478, %v446
      %v480 = vpop.permute.xlu0 %479
      %v482 = vmul.f32 %v475, %v480
      %v483 = vmul.f32 %v476, %v480
      %v484 = vmul.f32 %v477, %v480
      %488 = vrot.lane.b32.xlu0 %v482, 96
      %v489 = vpop.permute.xlu0 %488
      %490 = vrot.lane.b32.xlu0 %v483, 96
      %v491 = vpop.permute.xlu0 %490
      %492 = vrot.lane.b32.xlu0 %v484, 96
      %v493 = vpop.permute.xlu0 %492
      %vm494 = vcmask 785408
      %v495 = vsel %vm494, %v489, %v491
      %v496 = vsel %vm494, %v491, %v493
      %v500 = vadd.f32 %v472, %v489
      %v501 = vadd.f32 %v473, %v495
      %v502 = vadd.f32 %v474, %v496
      %504 = vset.pattern.permute.xlu0 1
      %505 = vperm.xlu0 %504, %v442
      %v506 = vpop.permute.xlu0 %505
      %v508 = vadd.f32 %v506, %v500
      %v509 = vadd.f32 %v506, %v501
      %v510 = vadd.f32 %v506, %v502
      %511 = vset.pattern.permute.xlu0 0
      %512 = vperm.xlu0 %511, %v446
      %v513 = vpop.permute.xlu0 %512
      %v515 = vmul.f32 %v443, %v513
      %v516 = vmul.f32 %v444, %v513
      %v517 = vmul.f32 %v445, %v513
      %518 = vset.pattern.permute.xlu0 3
      %519 = vperm.xlu0 %518, %v446
      %v520 = vpop.permute.xlu0 %519
      %v522 = vmul.f32 %v443, %v520
      %v523 = vmul.f32 %v444, %v520
      %v524 = vmul.f32 %v445, %v520
      %528 = vrot.lane.b32.xlu0 %v522, 112
      %v529 = vpop.permute.xlu0 %528
      %530 = vrot.lane.b32.xlu0 %v523, 112
      %v531 = vpop.permute.xlu0 %530
      %532 = vrot.lane.b32.xlu0 %v524, 112
      %v533 = vpop.permute.xlu0 %532
      %v534 = vsel %vm467, %v529, %v531
      %v535 = vsel %vm467, %v531, %v533
      %v539 = vadd.f32 %v515, %v534
      %v540 = vadd.f32 %v516, %v535
      %v541 = vadd.f32 %v517, %v533
      %542 = vset.pattern.permute.xlu0 6
      %543 = vperm.xlu0 %542, %v446
      %v544 = vpop.permute.xlu0 %543
      %v546 = vmul.f32 %v475, %v544
      %v547 = vmul.f32 %v476, %v544
      %v548 = vmul.f32 %v477, %v544
      %552 = vrot.lane.b32.xlu0 %v546, 96
      %v553 = vpop.permute.xlu0 %552
      %554 = vrot.lane.b32.xlu0 %v547, 96
      %v555 = vpop.permute.xlu0 %554
      %556 = vrot.lane.b32.xlu0 %v548, 96
      %v557 = vpop.permute.xlu0 %556
      %v558 = vsel %vm494, %v553, %v555
      %v559 = vsel %vm494, %v555, %v557
      %v563 = vadd.f32 %v539, %v553
      %v564 = vadd.f32 %v540, %v558
      %v565 = vadd.f32 %v541, %v559
      %568 = vrot.lane.b32.xlu0 %v366, 111
      %v569 = vpop.permute.xlu0 %568
      %570 = vrot.lane.b32.xlu0 %v367, 111
      %v571 = vpop.permute.xlu0 %570
      %vm572 = vcmask 908288
      %v573 = vsel %vm572, %v569, %v571
      %v577 = vmul.f32 %v563, %v569
      %v578 = vmul.f32 %v564, %v573
      %v579 = vmul.f32 %v565, %v571
      %583 = vrot.lane.b32.xlu0 %v577, 1
      %v584 = vpop.permute.xlu0 %583
      %585 = vrot.lane.b32.xlu0 %v578, 1
      %v586 = vpop.permute.xlu0 %585
      %587 = vrot.lane.b32.xlu0 %v579, 1
      %v588 = vpop.permute.xlu0 %587
      %vm589 = vcmask 7168
      %v590 = vsel %vm589, %v584, %v586
      %v591 = vsel %vm589, %v586, %v588
      %v595 = vadd.f32 %v508, %v584
      %v596 = vadd.f32 %v509, %v590
      %v597 = vadd.f32 %v510, %v591
      %598 = vset.pattern.permute.xlu0 2
      %599 = vperm.xlu0 %598, %v446
      %v600 = vpop.permute.xlu0 %599
      %v602 = vmul.f32 %v443, %v600
      %v603 = vmul.f32 %v444, %v600
      %v604 = vmul.f32 %v445, %v600
      %605 = vset.pattern.permute.xlu0 5
      %606 = vperm.xlu0 %605, %v446
      %v607 = vpop.permute.xlu0 %606
      %v609 = vmul.f32 %v475, %v607
      %v610 = vmul.f32 %v476, %v607
      %v611 = vmul.f32 %v477, %v607
      %615 = vrot.lane.b32.xlu0 %v609, 112
      %v616 = vpop.permute.xlu0 %615
      %617 = vrot.lane.b32.xlu0 %v610, 112
      %v618 = vpop.permute.xlu0 %617
      %619 = vrot.lane.b32.xlu0 %v611, 112
      %v620 = vpop.permute.xlu0 %619
      %v621 = vsel %vm467, %v616, %v618
      %v622 = vsel %vm467, %v618, %v620
      %v626 = vadd.f32 %v602, %v616
      %v627 = vadd.f32 %v603, %v621
      %v628 = vadd.f32 %v604, %v622
      %629 = vset.pattern.permute.xlu0 8
      %630 = vperm.xlu0 %629, %v446
      %v631 = vpop.permute.xlu0 %630
      %v633 = vmul.f32 %v475, %v631
      %v634 = vmul.f32 %v476, %v631
      %v635 = vmul.f32 %v477, %v631
      %639 = vrot.lane.b32.xlu0 %v633, 96
      %v640 = vpop.permute.xlu0 %639
      %641 = vrot.lane.b32.xlu0 %v634, 96
      %v642 = vpop.permute.xlu0 %641
      %643 = vrot.lane.b32.xlu0 %v635, 96
      %v644 = vpop.permute.xlu0 %643
      %v645 = vsel %vm494, %v640, %v642
      %v646 = vsel %vm494, %v642, %v644
      %v650 = vadd.f32 %v626, %v640
      %v651 = vadd.f32 %v627, %v645
      %v652 = vadd.f32 %v628, %v646
      %655 = vrot.lane.b32.xlu0 %v372, 113
      %v656 = vpop.permute.xlu0 %655
      %657 = vrot.lane.b32.xlu0 %v373, 113
      %v658 = vpop.permute.xlu0 %657
      %vm659 = vcmask 924672
      %v660 = vsel %vm659, %v656, %v658
      %v664 = vmul.f32 %v650, %v656
      %v665 = vmul.f32 %v651, %v660
      %v666 = vmul.f32 %v652, %v658
      %670 = vrot.lane.b32.xlu0 %v664, 127
      %v671 = vpop.permute.xlu0 %670
      %672 = vrot.lane.b32.xlu0 %v665, 127
      %v673 = vpop.permute.xlu0 %672
      %674 = vrot.lane.b32.xlu0 %v666, 127
      %v675 = vpop.permute.xlu0 %674
      %vm676 = vcmask 1039360
      %v677 = vsel %vm676, %v671, %v673
      %v678 = vsel %vm676, %v673, %v675
      %v682 = vadd.f32 %v595, %v677
      %v683 = vadd.f32 %v596, %v678
      %v684 = vadd.f32 %v597, %v675
      %v685 = vld [vmem:[%s4] sm:$0xff]
      %689 = vrot.lane.b32.xlu0 %v682, 16
      %v690 = vpop.permute.xlu0 %689
      %691 = vrot.lane.b32.xlu0 %v683, 16
      %v692 = vpop.permute.xlu0 %691
      %693 = vrot.lane.b32.xlu0 %v684, 16
      %v694 = vpop.permute.xlu0 %693
      %vm695 = vcmask 130048
      %v696 = vsel %vm695, %v690, %v692
      %v697 = vsel %vm695, %v692, %v694
      %v700 = vadd.f32 %v696, %v697
      %701 = vadd.xlane.f32.xlu0 %v700
      %v702 = vpop.xlane.xlu0 %701
      %v703 = vmul.f32 %v702, %v685
      %vm704 = vcmask 15360
      %v705 = vsel %vm704, %v703, 0.0
      %v706 = vrot.slane %v705, 4
      %v707 = vadd.f32 %v705, %v706
      %v708 = vrot.slane %v707, 2
      %v709 = vadd.f32 %v707, %v708
      %v710 = vrot.slane %v709, 1
      %v711 = vadd.f32 %v709, %v710
      %v712 = vmul.f32 %v711, %v685
      %v713 = vsel %vm704, %v712, 0.0
      %714 = vadd.xlane.f32.xlu0 %v713
      %v715 = vpop.xlane.xlu0 %714
      %v716 = vmul.f32 %v715, 0.0009765625
      %v717 = vsub.f32 %v682, %v716
      %v718 = vsub.f32 %v683, %v716
      %v719 = vsub.f32 %v684, %v716
      %v720 = vmul.f32 %v717, %v717
      %v721 = vmul.f32 %v718, %v718
      %v722 = vmul.f32 %v719, %v719
      %726 = vrot.lane.b32.xlu0 %v720, 16
      %v727 = vpop.permute.xlu0 %726
      %728 = vrot.lane.b32.xlu0 %v721, 16
      %v729 = vpop.permute.xlu0 %728
      %730 = vrot.lane.b32.xlu0 %v722, 16
      %v731 = vpop.permute.xlu0 %730
      %v732 = vsel %vm695, %v727, %v729
      %v733 = vsel %vm695, %v729, %v731
      %v736 = vadd.f32 %v732, %v733
      %737 = vadd.xlane.f32.xlu0 %v736
      %v738 = vpop.xlane.xlu0 %737
      %v739 = vmul.f32 %v738, %v685
      %v740 = vsel %vm704, %v739, 0.0
      %v741 = vrot.slane %v740, 4
      %v742 = vadd.f32 %v740, %v741
      %v743 = vrot.slane %v742, 2
      %v744 = vadd.f32 %v742, %v743
      %v745 = vrot.slane %v744, 1
      %v746 = vadd.f32 %v744, %v745
      %v747 = vmul.f32 %v746, %v685
      %v748 = vsel %vm704, %v747, 0.0
      %749 = vadd.xlane.f32.xlu0 %v748
      %v750 = vpop.xlane.xlu0 %749
      %v751 = vmul.f32 %v750, 0.0009765625
      %v752 = vadd.f32 %v751, 1e-05
      %v753 = vrsqrt.pop %v752
      %v754 = vmul.f32 %v753, %v752
      %v755 = vmul.f32 %v754, %v753
      %v756 = vmul.f32 0.5, %v755
      %v757 = vsub.f32 1.5, %v756
      %v758 = vmul.f32 %v753, %v757
      %vm759 = vweird.f32 %v752
      %vm760 = vweird.f32 %v753
      %vm761 = vmor %vm759, %vm760
      %v762 = vsel %vm761, %v753, %v758
      %v763 = vmul.f32 %v762, %v442
      %765 = vset.pattern.permute.xlu0 2
      %766 = vperm.xlu0 %765, %v763
      %v767 = vpop.permute.xlu0 %766
      %v769 = vmul.f32 %v717, %v767
      %v770 = vmul.f32 %v718, %v767
      %v771 = vmul.f32 %v719, %v767
      %772 = vset.pattern.permute.xlu0 3
      %773 = vperm.xlu0 %772, %v442
      %v774 = vpop.permute.xlu0 %773
      %v776 = vadd.f32 %v769, %v774
      %v777 = vadd.f32 %v770, %v774
      %v778 = vadd.f32 %v771, %v774
      %vm779 = vcmp.ge.f32.partialorder %v776, 0.0
      %vm780 = vcmp.ge.f32.partialorder %v777, 0.0
      %vm781 = vcmp.ge.f32.partialorder %v778, 0.0
      %v782 = vmul.f32 %v776, 0.01
      %v783 = vmul.f32 %v777, 0.01
      %v784 = vmul.f32 %v778, 0.01
      %v785 = vsel %vm779, %v776, %v782
      %v786 = vsel %vm780, %v777, %v783
      %v787 = vsel %vm781, %v778, %v784
      %791 = vrot.lane.b32.xlu0 %v785, 16
      %v792 = vpop.permute.xlu0 %791
      %793 = vrot.lane.b32.xlu0 %v786, 16
      %v794 = vpop.permute.xlu0 %793
      %795 = vrot.lane.b32.xlu0 %v787, 16
      %v796 = vpop.permute.xlu0 %795
      %v797 = vsel %vm695, %v792, %v794
      %v798 = vsel %vm695, %v794, %v796
      %801 = vst [vmem:[%s332] sm:$0xff] %v797
      %802 = vst [vmem:[%s332 + $0x8] sm:$0xff] %v798
      %v803 = vld [vmem:[%s332] sm:$0xff]
      %v804 = vld [vmem:[%s332 + $0x8] sm:$0xff]
      %v805 = vld [vmem:[%s5] sm:$0xff]
      %v806 = vld [vmem:[%s7] sm:$0xff]
      %808 = vset.pattern.permute.xlu0 0
      %809 = vperm.xlu0 %808, %v806
      %v810 = vpop.permute.xlu0 %809
      %vm812 = vcmask 64512
      %v814 = vsel %vm812, %v805, 0
      %816 = vmatpush.msra.mxu0 0.0
      %817 = vmatpush.msra.mxu0 0.0
      %818 = vmatpush.msra.mxu0 0.0
      %819 = vmatpush.msra.mxu0 0.0
      %820 = vmatpush.msra.mxu0 0.0
      %821 = vmatpush.msra.mxu0 0.0
      %822 = vmatpush.msra.mxu0 0.0
      %823 = vmatpush.msra.mxu0 0.0
      %824 = vmatpush.msra.mxu0 0.0
      %825 = vmatpush.msra.mxu0 0.0
      %826 = vmatpush.msra.mxu0 0.0
      %827 = vmatpush.msra.mxu0 0.0
      %828 = vmatpush.msra.mxu0 0.0
      %829 = vmatpush.msra.mxu0 0.0
      %830 = vmatpush.msra.mxu0 0.0
      %831 = vmatpush.msra.mxu0 %v803
      %832 = vmatmul.f32.gmra.mxu0 %v814
      %v833 = vpop.f32.mrf.mxu0
      %v834 = vadd.f32 %v810, %v833
      %835 = vdwg.mxu0
      %836 = vmatpush.msra.mxu0 0.0
      %837 = vmatpush.msra.mxu0 0.0
      %838 = vmatpush.msra.mxu0 0.0
      %839 = vmatpush.msra.mxu0 0.0
      %840 = vmatpush.msra.mxu0 0.0
      %841 = vmatpush.msra.mxu0 0.0
      %842 = vmatpush.msra.mxu0 0.0
      %843 = vmatpush.msra.mxu0 0.0
      %844 = vmatpush.msra.mxu0 0.0
      %845 = vmatpush.msra.mxu0 0.0
      %846 = vmatpush.msra.mxu0 0.0
      %847 = vmatpush.msra.mxu0 0.0
      %848 = vmatpush.msra.mxu0 0.0
      %849 = vmatpush.msra.mxu0 0.0
      %850 = vmatpush.msra.mxu0 0.0
      %851 = vmatpush.msra.mxu0 %v804
      %852 = vmatmul.f32.gmra.mxu0 %v814
      %v853 = vpop.f32.mrf.mxu0
      %v854 = vadd.f32 %v810, %v853
      %855 = vdwg.mxu0
      %856 = vst [vmem:[#allocation2 + $0x8] sm:$0xff] %v834
      %857 = vst [vmem:[#allocation2 + $0x10] sm:$0xff] %v854
      %v858 = vld [vmem:[%s7] sm:$0xff]
      %v859 = vld [vmem:[#allocation2] sm:$0xff]
      %v860 = vld [vmem:[#allocation2 + $0x8] sm:$0xff]
      %v861 = vld [vmem:[#allocation2 + $0x10] sm:$0xff]
      %v862 = vld [vmem:[%s6] sm:$0xff]
      %864 = vset.pattern.permute.xlu0 1
      %865 = vperm.xlu0 %864, %v862
      %v866 = vpop.permute.xlu0 %865
      %v868 = vmul.f32 %v859, %v866
      %v869 = vmul.f32 %v860, %v866
      %v870 = vmul.f32 %v861, %v866
      %871 = vset.pattern.permute.xlu0 4
      %872 = vperm.xlu0 %871, %v862
      %v873 = vpop.permute.xlu0 %872
      %v875 = vmul.f32 %v860, %v873
      %v876 = vmul.f32 %v861, %v873
      %879 = vrot.lane.b32.xlu0 %v875, 112
      %v880 = vpop.permute.xlu0 %879
      %881 = vrot.lane.b32.xlu0 %v876, 112
      %v882 = vpop.permute.xlu0 %881
      %v883 = vsel %vm467, %v880, %v882
      %v887 = vadd.f32 %v868, %v880
      %v888 = vadd.f32 %v869, %v883
      %v889 = vadd.f32 %v870, %v882
      %v890 = vld [vmem:[#allocation2 + $0x8] sm:$0xff]
      %v891 = vld [vmem:[#allocation2 + $0x10] sm:$0xff]
      %v892 = vld [vmem:[#allocation2 + $0x18] sm:$0xff]
      %893 = vset.pattern.permute.xlu0 7
      %894 = vperm.xlu0 %893, %v862
      %v895 = vpop.permute.xlu0 %894
      %v897 = vmul.f32 %v890, %v895
      %v898 = vmul.f32 %v891, %v895
      %v899 = vmul.f32 %v892, %v895
      %903 = vrot.lane.b32.xlu0 %v897, 96
      %v904 = vpop.permute.xlu0 %903
      %905 = vrot.lane.b32.xlu0 %v898, 96
      %v906 = vpop.permute.xlu0 %905
      %907 = vrot.lane.b32.xlu0 %v899, 96
      %v908 = vpop.permute.xlu0 %907
      %v909 = vsel %vm494, %v904, %v906
      %v910 = vsel %vm494, %v906, %v908
      %v914 = vadd.f32 %v887, %v904
      %v915 = vadd.f32 %v888, %v909
      %v916 = vadd.f32 %v889, %v910
      %918 = vset.pattern.permute.xlu0 1
      %919 = vperm.xlu0 %918, %v858
      %v920 = vpop.permute.xlu0 %919
      %v922 = vadd.f32 %v920, %v914
      %v923 = vadd.f32 %v920, %v915
      %v924 = vadd.f32 %v920, %v916
      %925 = vset.pattern.permute.xlu0 0
      %926 = vperm.xlu0 %925, %v862
      %v927 = vpop.permute.xlu0 %926
      %v929 = vmul.f32 %v859, %v927
      %v930 = vmul.f32 %v860, %v927
      %v931 = vmul.f32 %v861, %v927
      %932 = vset.pattern.permute.xlu0 3
      %933 = vperm.xlu0 %932, %v862
      %v934 = vpop.permute.xlu0 %933
      %v936 = vmul.f32 %v859, %v934
      %v937 = vmul.f32 %v860, %v934
      %v938 = vmul.f32 %v861, %v934
      %942 = vrot.lane.b32.xlu0 %v936, 112
      %v943 = vpop.permute.xlu0 %942
      %944 = vrot.lane.b32.xlu0 %v937, 112
      %v945 = vpop.permute.xlu0 %944
      %946 = vrot.lane.b32.xlu0 %v938, 112
      %v947 = vpop.permute.xlu0 %946
      %v948 = vsel %vm467, %v943, %v945
      %v949 = vsel %vm467, %v945, %v947
      %v953 = vadd.f32 %v929, %v948
      %v954 = vadd.f32 %v930, %v949
      %v955 = vadd.f32 %v931, %v947
      %956 = vset.pattern.permute.xlu0 6
      %957 = vperm.xlu0 %956, %v862
      %v958 = vpop.permute.xlu0 %957
      %v960 = vmul.f32 %v890, %v958
      %v961 = vmul.f32 %v891, %v958
      %v962 = vmul.f32 %v892, %v958
      %966 = vrot.lane.b32.xlu0 %v960, 96
      %v967 = vpop.permute.xlu0 %966
      %968 = vrot.lane.b32.xlu0 %v961, 96
      %v969 = vpop.permute.xlu0 %968
      %970 = vrot.lane.b32.xlu0 %v962, 96
      %v971 = vpop.permute.xlu0 %970
      %v972 = vsel %vm494, %v967, %v969
      %v973 = vsel %vm494, %v969, %v971
      %v977 = vadd.f32 %v953, %v967
      %v978 = vadd.f32 %v954, %v972
      %v979 = vadd.f32 %v955, %v973
      %v980 = vmul.f32 %v977, %v569
      %v981 = vmul.f32 %v978, %v573
      %v982 = vmul.f32 %v979, %v571
      %986 = vrot.lane.b32.xlu0 %v980, 1
      %v987 = vpop.permute.xlu0 %986
      %988 = vrot.lane.b32.xlu0 %v981, 1
      %v989 = vpop.permute.xlu0 %988
      %990 = vrot.lane.b32.xlu0 %v982, 1
      %v991 = vpop.permute.xlu0 %990
      %v992 = vsel %vm589, %v987, %v989
      %v993 = vsel %vm589, %v989, %v991
      %v997 = vadd.f32 %v922, %v987
      %v998 = vadd.f32 %v923, %v992
      %v999 = vadd.f32 %v924, %v993
      %1000 = vset.pattern.permute.xlu0 2
      %1001 = vperm.xlu0 %1000, %v862
      %v1002 = vpop.permute.xlu0 %1001
      %v1004 = vmul.f32 %v859, %v1002
      %v1005 = vmul.f32 %v860, %v1002
      %v1006 = vmul.f32 %v861, %v1002
      %1007 = vset.pattern.permute.xlu0 5
      %1008 = vperm.xlu0 %1007, %v862
      %v1009 = vpop.permute.xlu0 %1008
      %v1011 = vmul.f32 %v890, %v1009
      %v1012 = vmul.f32 %v891, %v1009
      %v1013 = vmul.f32 %v892, %v1009
      %1017 = vrot.lane.b32.xlu0 %v1011, 112
      %v1018 = vpop.permute.xlu0 %1017
      %1019 = vrot.lane.b32.xlu0 %v1012, 112
      %v1020 = vpop.permute.xlu0 %1019
      %1021 = vrot.lane.b32.xlu0 %v1013, 112
      %v1022 = vpop.permute.xlu0 %1021
      %v1023 = vsel %vm467, %v1018, %v1020
      %v1024 = vsel %vm467, %v1020, %v1022
      %v1028 = vadd.f32 %v1004, %v1018
      %v1029 = vadd.f32 %v1005, %v1023
      %v1030 = vadd.f32 %v1006, %v1024
      %1031 = vset.pattern.permute.xlu0 8
      %1032 = vperm.xlu0 %1031, %v862
      %v1033 = vpop.permute.xlu0 %1032
      %v1035 = vmul.f32 %v890, %v1033
      %v1036 = vmul.f32 %v891, %v1033
      %v1037 = vmul.f32 %v892, %v1033
      %1041 = vrot.lane.b32.xlu0 %v1035, 96
      %v1042 = vpop.permute.xlu0 %1041
      %1043 = vrot.lane.b32.xlu0 %v1036, 96
      %v1044 = vpop.permute.xlu0 %1043
      %1045 = vrot.lane.b32.xlu0 %v1037, 96
      %v1046 = vpop.permute.xlu0 %1045
      %v1047 = vsel %vm494, %v1042, %v1044
      %v1048 = vsel %vm494, %v1044, %v1046
      %v1052 = vadd.f32 %v1028, %v1042
      %v1053 = vadd.f32 %v1029, %v1047
      %v1054 = vadd.f32 %v1030, %v1048
      %v1055 = vmul.f32 %v1052, %v656
      %v1056 = vmul.f32 %v1053, %v660
      %v1057 = vmul.f32 %v1054, %v658
      %1061 = vrot.lane.b32.xlu0 %v1055, 127
      %v1062 = vpop.permute.xlu0 %1061
      %1063 = vrot.lane.b32.xlu0 %v1056, 127
      %v1064 = vpop.permute.xlu0 %1063
      %1065 = vrot.lane.b32.xlu0 %v1057, 127
      %v1066 = vpop.permute.xlu0 %1065
      %v1067 = vsel %vm676, %v1062, %v1064
      %v1068 = vsel %vm676, %v1064, %v1066
      %v1072 = vadd.f32 %v997, %v1067
      %v1073 = vadd.f32 %v998, %v1068
      %v1074 = vadd.f32 %v999, %v1066
      %v1075 = vld [vmem:[%s8] sm:$0xff]
      %1079 = vrot.lane.b32.xlu0 %v1072, 16
      %v1080 = vpop.permute.xlu0 %1079
      %1081 = vrot.lane.b32.xlu0 %v1073, 16
      %v1082 = vpop.permute.xlu0 %1081
      %1083 = vrot.lane.b32.xlu0 %v1074, 16
      %v1084 = vpop.permute.xlu0 %1083
      %v1085 = vsel %vm695, %v1080, %v1082
      %v1086 = vsel %vm695, %v1082, %v1084
      %v1089 = vadd.f32 %v1085, %v1086
      %1090 = vadd.xlane.f32.xlu0 %v1089
      %v1091 = vpop.xlane.xlu0 %1090
      %v1092 = vmul.f32 %v1091, %v1075
      %v1093 = vsel %vm704, %v1092, 0.0
      %v1094 = vrot.slane %v1093, 4
      %v1095 = vadd.f32 %v1093, %v1094
      %v1096 = vrot.slane %v1095, 2
      %v1097 = vadd.f32 %v1095, %v1096
      %v1098 = vrot.slane %v1097, 1
      %v1099 = vadd.f32 %v1097, %v1098
      %v1100 = vmul.f32 %v1099, %v1075
      %v1101 = vsel %vm704, %v1100, 0.0
      %1102 = vadd.xlane.f32.xlu0 %v1101
      %v1103 = vpop.xlane.xlu0 %1102
      %v1104 = vmul.f32 %v1103, 0.0009765625
      %v1105 = vsub.f32 %v1072, %v1104
      %v1106 = vsub.f32 %v1073, %v1104
      %v1107 = vsub.f32 %v1074, %v1104
      %v1108 = vmul.f32 %v1105, %v1105
      %v1109 = vmul.f32 %v1106, %v1106
      %v1110 = vmul.f32 %v1107, %v1107
      %1114 = vrot.lane.b32.xlu0 %v1108, 16
      %v1115 = vpop.permute.xlu0 %1114
      %1116 = vrot.lane.b32.xlu0 %v1109, 16
      %v1117 = vpop.permute.xlu0 %1116
      %1118 = vrot.lane.b32.xlu0 %v1110, 16
      %v1119 = vpop.permute.xlu0 %1118
      %v1120 = vsel %vm695, %v1115, %v1117
      %v1121 = vsel %vm695, %v1117, %v1119
      %v1124 = vadd.f32 %v1120, %v1121
      %1125 = vadd.xlane.f32.xlu0 %v1124
      %v1126 = vpop.xlane.xlu0 %1125
      %v1127 = vmul.f32 %v1126, %v1075
      %v1128 = vsel %vm704, %v1127, 0.0
      %v1129 = vrot.slane %v1128, 4
      %v1130 = vadd.f32 %v1128, %v1129
      %v1131 = vrot.slane %v1130, 2
      %v1132 = vadd.f32 %v1130, %v1131
      %v1133 = vrot.slane %v1132, 1
      %v1134 = vadd.f32 %v1132, %v1133
      %v1135 = vmul.f32 %v1134, %v1075
      %v1136 = vsel %vm704, %v1135, 0.0
      %1137 = vadd.xlane.f32.xlu0 %v1136
      %v1138 = vpop.xlane.xlu0 %1137
      %v1139 = vmul.f32 %v1138, 0.0009765625
      %v1140 = vadd.f32 %v1139, 1e-05
      %v1141 = vrsqrt.pop %v1140
      %v1142 = vmul.f32 %v1141, %v1140
      %v1143 = vmul.f32 %v1142, %v1141
      %v1144 = vmul.f32 0.5, %v1143
      %v1145 = vsub.f32 1.5, %v1144
      %v1146 = vmul.f32 %v1141, %v1145
      %vm1147 = vweird.f32 %v1140
      %vm1148 = vweird.f32 %v1141
      %vm1149 = vmor %vm1147, %vm1148
      %v1150 = vsel %vm1149, %v1141, %v1146
      %v1151 = vmul.f32 %v1150, %v858
      %1153 = vset.pattern.permute.xlu0 2
      %1154 = vperm.xlu0 %1153, %v1151
      %v1155 = vpop.permute.xlu0 %1154
      %v1157 = vmul.f32 %v1105, %v1155
      %v1158 = vmul.f32 %v1106, %v1155
      %v1159 = vmul.f32 %v1107, %v1155
      %1160 = vset.pattern.permute.xlu0 3
      %1161 = vperm.xlu0 %1160, %v858
      %v1162 = vpop.permute.xlu0 %1161
      %v1164 = vadd.f32 %v1157, %v1162
      %v1165 = vadd.f32 %v1158, %v1162
      %v1166 = vadd.f32 %v1159, %v1162
      %vm1167 = vcmp.ge.f32.partialorder %v1164, 0.0
      %vm1168 = vcmp.ge.f32.partialorder %v1165, 0.0
      %vm1169 = vcmp.ge.f32.partialorder %v1166, 0.0
      %v1170 = vmul.f32 %v1164, 0.01
      %v1171 = vmul.f32 %v1165, 0.01
      %v1172 = vmul.f32 %v1166, 0.01
      %v1173 = vsel %vm1167, %v1164, %v1170
      %v1174 = vsel %vm1168, %v1165, %v1171
      %v1175 = vsel %vm1169, %v1166, %v1172
      %v1176 = vld [vmem:[%s332] sm:$0xff]
      %v1177 = vld [vmem:[%s332 + $0x8] sm:$0xff]
      %1181 = vrot.lane.b32.xlu0 %v1173, 16
      %v1182 = vpop.permute.xlu0 %1181
      %1183 = vrot.lane.b32.xlu0 %v1174, 16
      %v1184 = vpop.permute.xlu0 %1183
      %1185 = vrot.lane.b32.xlu0 %v1175, 16
      %v1186 = vpop.permute.xlu0 %1185
      %v1187 = vsel %vm695, %v1182, %v1184
      %v1188 = vsel %vm695, %v1184, %v1186
      %v1191 = vadd.f32 %v1176, %v1187
      %v1192 = vadd.f32 %v1177, %v1188
      %1193 = vst [vmem:[%s332] sm:$0xff] %v1191
      %1194 = vst [vmem:[%s332 + $0x8] sm:$0xff] %v1192
      %p1195 = scmp.lt.s32.totalorder %s20, 1
      %s1196 = scalar_select %p1195, %s20, 1
      %s1197 = smul.addr %s1196, 2
      %s1198 = smul.addr %s1197, 8
      %s1199 = scalar_lea.vmem %s9, %s1198
      // Predicated region
      $region57: #{unet_block_dw_cf_res.1} parent=55 // pred_check
        %p1200 = pneg %p232
      $region58: #{unet_block_dw_cf_res.1} parent=55 // pred_check_branch
        %1202 = sbr.rel (%p1200) target = $region60
      $region59: #{unet_block_dw_cf_res.1} parent=55 // pred_region
        _
      $region60: #{unet_block_dw_cf_res.1} parent=55 // pred_fallthru
        _
    $region56: #{unet_block_dw_cf_res.1} parent=5 // pred_fallthru
      _
    %p1203 = scmp.le.s32.totalorder 2, %s15
    // Predicated region
    $region61: #{unet_block_dw_cf_res.1} parent=5 // pred_check
      %p1204 = pneg %p1203
    $region62: #{unet_block_dw_cf_res.1} parent=5 // pred_check_branch
      %1206 = sbr.rel (%p1204) target = $region64
    $region63: #{unet_block_dw_cf_res.1} parent=5 // pred_region
      %s1207 = ssub.s32 %s15, 2
      // Predicated region
      $region65: #{unet_block_dw_cf_res.1} parent=63 // pred_check
        %p1208 = pneg %p238
      $region66: #{unet_block_dw_cf_res.1} parent=63 // pred_check_branch
        %1210 = sbr.rel (%p1208) target = $region68
      $region67: #{unet_block_dw_cf_res.1} parent=63 // pred_region
        %p1211 = scmp.lt.s32.totalorder %s21, 1
        %s1212 = scalar_select %p1211, %s21, 1
        %s1213 = smul.addr %s1212, 2
        %s1214 = smul.addr %s1213, 8
        %s1215 = scalar_lea.vmem %s9, %s1214
      $region68: #{unet_block_dw_cf_res.1} parent=63 // pred_fallthru
        _
    $region64: #{unet_block_dw_cf_res.1} parent=5 // pred_fallthru
      _
  $region6: #{unet_block_dw_cf_res.1} parent=0 // loop_footer
    %s19 = sadd.s32 1, %s15
  $region7: #{unet_block_dw_cf_res.1} parent=0 // loop_footer_branch
    %14 = sbr.rel target = $region3
  $region8: #{unet_block_dw_cf_res.1} parent=0 // loop_exit
    _

</llo_original>
